<compile_context>
chip_gen: v7x
topology: tpu7x:2x2x1
jax: 0.10.0
libtpu: 0.0.40
codegen_flags: <defaults>
</compile_context>

<pallas_src>
import functools

import jax
import jax.numpy as jnp
from jax import lax
from jax.experimental import pallas as pl
from jax.experimental.pallas import tpu as pltpu


# ----------------------------- kernel helpers --------------------------------

def _layer_norm(v, g, b, eps=1e-6):
    # gamma * (x - mean) / (std + eps) + beta   (unbiased std, like torch.std)
    mean = jnp.mean(v, axis=-1, keepdims=True)
    var = jnp.sum((v - mean) ** 2, axis=-1, keepdims=True) / (v.shape[-1] - 1)
    return g * (v - mean) / (jnp.sqrt(var) + eps) + b


def _shift_down(v3, s):
    # v3: [Bb, L, C] -> shifted down by s rows along the sequence axis
    # (independently per batch), zero-fill at the top == 'left' causal padding.
    if s == 0:
        return v3
    Bb, L, C = v3.shape
    return jnp.concatenate(
        [jnp.zeros((Bb, s, C), v3.dtype), v3[:, :L - s, :]], axis=1)


def _causal_conv_folded(v3, w_stacked_ref, bias, kernel_size=3):
    # ONE matmul per conv instead of `kernel_size` small-K matmuls:
    #   shifted = [ x<<2 | x<<1 | x ]      (lane concat)      [Bb, L, k*Cin]
    #   y       = shifted @ [W[:,:,0]^T ; W[:,:,1]^T ; W[:,:,2]^T] + bias
    # which is exactly the left-padded Conv1d(kernel_size=3):
    #   y[t] = bias + sum_j x[t + j - (k-1)] @ W[:, :, j]^T
    Bb, L, Cin = v3.shape
    shifted = jnp.concatenate(
        [_shift_down(v3, kernel_size - 1 - j) for j in range(kernel_size)],
        axis=-1)                                               # [Bb, L, k*Cin] f32
    flat = shifted.reshape(Bb * L, kernel_size * Cin).astype(jnp.bfloat16)
    out = jnp.dot(flat, w_stacked_ref[...],
                  preferred_element_type=jnp.float32)          # [Bb*L, Cout] f32
    return out + bias


# ------------------------------- the kernel ----------------------------------

def _emo_attention_kernel(num_heads,
                          x_ref, m_ref, mt_ref, mask_ref,
                          ln1_g_ref, ln1_b_ref,
                          wq_ref, wk_ref, wv_ref, wo_ref,
                          ln2_g_ref, ln2_b_ref,
                          w1_ref, b1_ref, w2_ref, b2_ref,
                          y_ref, attn_ref):
    Bb, Lq, H = x_ref.shape
    Lm = m_ref.shape[1]
    Lk = 2 * Lm
    Dk = wq_ref.shape[1]
    Dv = wv_ref.shape[1]
    dk = Dk // num_heads
    dv = Dv // num_heads
    query_scale = float(dk) ** -0.5

    x3 = x_ref[...]                                   # [Bb, Lq, H] f32
    xf = x3.reshape(Bb * Lq, H)

    # K/V source: concat(m, m_tilt) along seq, done in VMEM (kernel does not
    # read the wrapper-side m_concat HBM array at all).
    mm3 = jnp.concatenate([m_ref[...], mt_ref[...]], axis=1)   # [Bb, Lk, H] f32
    mmf = mm3.reshape(Bb * Lk, H).astype(jnp.bfloat16)

    # mask_src = concat(mask, mask) along key axis; True == masked
    mask3 = jnp.concatenate([mask_ref[...], mask_ref[...]], axis=2) > 0  # [Bb,1,Lk]

    # ---- pre-LN for MHA (layer_norm_mha_dec), f32 elementwise ----
    xn = _layer_norm(xf, ln1_g_ref[...], ln1_b_ref[...])       # [Bb*Lq, H]

    # ---- Q / K / V projections (no bias): bf16 operands, f32 accumulation ----
    q = jnp.dot(xn.astype(jnp.bfloat16), wq_ref[...],
                preferred_element_type=jnp.float32)            # [Bb*Lq, Dk]
    k = jnp.dot(mmf, wk_ref[...], preferred_element_type=jnp.float32)   # [Bb*Lk, Dk]
    v = jnp.dot(mmf, wv_ref[...], preferred_element_type=jnp.float32)   # [Bb*Lk, Dv]
    q3 = q.reshape(Bb, Lq, Dk)
    k3 = k.reshape(Bb, Lk, Dk)
    v3 = v.reshape(Bb, Lk, Dv)

    # ---- attention: heads unrolled, each head batched over all Bb batches ----
    attn_sum = jnp.zeros((Bb, Lq, Lk), jnp.float32)
    ctx_parts = []
    for h in range(num_heads):
        qh = (q3[:, :, h * dk:(h + 1) * dk] * query_scale).astype(jnp.bfloat16)
        kh = k3[:, :, h * dk:(h + 1) * dk].astype(jnp.bfloat16)
        vh = v3[:, :, h * dv:(h + 1) * dv].astype(jnp.bfloat16)
        logits = lax.dot_general(qh, kh, (((2,), (2,)), ((0,), (0,))),
                                 preferred_element_type=jnp.float32)  # [Bb,Lq,Lk]
        logits = jnp.where(mask3, -1e18, logits)     # masked_fill(mask, -1e18)
        attn_sum = attn_sum + logits                 # pre-softmax attention weights
        # stable softmax (f32 elementwise, EUP reciprocal)
        lmax = jnp.max(logits, axis=-1, keepdims=True)
        p = jnp.exp(logits - lmax)
        p = p * pl.reciprocal(jnp.sum(p, axis=-1, keepdims=True), approx=True)
        ctx_parts.append(lax.dot_general(
            p.astype(jnp.bfloat16), vh, (((2,), (1,)), ((0,), (0,))),
            preferred_element_type=jnp.float32))     # [Bb, Lq, dv]
    ctx = jnp.concatenate(ctx_parts, axis=-1)        # [Bb, Lq, Dv] (merge heads)

    attn_ref[...] = attn_sum * (1.0 / num_heads)

    # ---- output projection + residual ----
    y_att = jnp.dot(ctx.reshape(Bb * Lq, Dv).astype(jnp.bfloat16), wo_ref[...],
                    preferred_element_type=jnp.float32)        # [Bb*Lq, H]
    x_res = xf + y_att                                         # dropout(p=0) == id

    # ---- pre-LN FFN + folded causal-conv FFN ('cc', left padding) ----
    xn2 = _layer_norm(x_res, ln2_g_ref[...], ln2_b_ref[...])
    h1 = _causal_conv_folded(xn2.reshape(Bb, Lq, H), w1_ref, b1_ref[...])  # [Bb*Lq,F]
    h1 = jnp.maximum(h1, 0.0)                                  # ReLU (relu_dropout=0)
    Ff = h1.shape[-1]
    h2 = _causal_conv_folded(h1.reshape(Bb, Lq, Ff), w2_ref, b2_ref[...])  # [Bb*Lq,H]

    y_ref[...] = (x_res + h2).reshape(Bb, Lq, H).astype(y_ref.dtype)


# ------------------------------- wrapper --------------------------------------

def complex_emo_attention_layer(inputs, params, num_heads, batch_block=2):
    """inputs = (x, m, m_tilt, attention_weight, mask) -> (y, m_concat, attn_w, mask)."""
    x, m, m_tilt, _attention_weight, mask = inputs   # attention_weight unused (as in PyTorch)
    B, Lq, H = x.shape
    Lm = m.shape[1]
    Lk = 2 * Lm

    Dk = params["wq"].shape[0]
    Dv = params["wv"].shape[0]
    F = params["conv1_w"].shape[0]

    # batch blocking: amortize per-grid-step overhead while keeping a parallel
    # batch grid axis (sharded across TensorCores on v7x).
    if B % batch_block != 0:
        batch_block = 1
    Bb = batch_block
    grid = (B // Bb,)

    # m_concat is part of the module's return value (plain-JAX glue only; the
    # kernel reads m / m_tilt directly and concatenates in VMEM).
    m_concat = jnp.concatenate([m, m_tilt], axis=1)            # [B, Lk, H]

    bf16 = jnp.bfloat16
    # parameter layout plumbing (PyTorch convention -> kernel layout)
    wq_t = params["wq"].T.astype(bf16)                         # [H, Dk]
    wk_t = params["wk"].T.astype(bf16)                         # [H, Dk]
    wv_t = params["wv"].T.astype(bf16)                         # [H, Dv]
    wo_t = params["wo"].T.astype(bf16)                         # [Dv, H]
    # conv weights stacked over taps so each causal conv is ONE matmul:
    #   rows [j*Cin:(j+1)*Cin] of the stacked weight = W[:, :, j]^T
    w1_stacked = jnp.concatenate(
        [params["conv1_w"][:, :, j].T for j in range(3)], axis=0).astype(bf16)  # [3H, F]
    w2_stacked = jnp.concatenate(
        [params["conv2_w"][:, :, j].T for j in range(3)], axis=0).astype(bf16)  # [3F, H]
    ln1_g = params["ln_mha_dec_gamma"].reshape(1, H)
    ln1_b = params["ln_mha_dec_beta"].reshape(1, H)
    ln2_g = params["ln_ffn_gamma"].reshape(1, H)
    ln2_b = params["ln_ffn_beta"].reshape(1, H)
    b1 = params["conv1_b"].reshape(1, F)
    b2 = params["conv2_b"].reshape(1, H)

    kernel = functools.partial(_emo_attention_kernel, num_heads)

    def full_spec(shape):
        n = len(shape)
        return pl.BlockSpec(shape, lambda b, n=n: (0,) * n)

    in_specs = [
        pl.BlockSpec((Bb, Lq, H), lambda b: (b, 0, 0)),    # x
        pl.BlockSpec((Bb, Lm, H), lambda b: (b, 0, 0)),    # m
        pl.BlockSpec((Bb, Lm, H), lambda b: (b, 0, 0)),    # m_tilt
        pl.BlockSpec((Bb, 1, Lm), lambda b: (b, 0, 0)),    # mask (int32, 1 == masked)
        full_spec((1, H)), full_spec((1, H)),              # LN mha_dec gamma / beta
        full_spec((H, Dk)), full_spec((H, Dk)),            # Wq^T, Wk^T
        full_spec((H, Dv)), full_spec((Dv, H)),            # Wv^T, Wo^T
        full_spec((1, H)), full_spec((1, H)),              # LN ffn gamma / beta
        full_spec((3 * H, F)), full_spec((1, F)),          # conv1 stacked taps, bias
        full_spec((3 * F, H)), full_spec((1, H)),          # conv2 stacked taps, bias
    ]
    out_specs = (
        pl.BlockSpec((Bb, Lq, H), lambda b: (b, 0, 0)),    # y
        pl.BlockSpec((Bb, Lq, Lk), lambda b: (b, 0, 0)),   # attention weights
    )
    out_shape = (
        jax.ShapeDtypeStruct((B, Lq, H), jnp.float32),
        jax.ShapeDtypeStruct((B, Lq, Lk), jnp.float32),
    )

    y, attn_w = pl.pallas_call(
        kernel,
        grid=grid,
        in_specs=in_specs,
        out_specs=out_specs,
        out_shape=out_shape,
        compiler_params=pltpu.CompilerParams(dimension_semantics=("parallel",)),
    )(x, m, m_tilt, mask.astype(jnp.int32),
      ln1_g, ln1_b, wq_t, wk_t, wv_t, wo_t,
      ln2_g, ln2_b, w1_stacked, b1, w2_stacked, b2)

    return y, m_concat, attn_w, mask


# ------------------------ pure-JAX reference (for checking) -------------------

def reference_forward(inputs, params, num_heads):
    x, m, m_tilt, _aw, mask = inputs
    m_concat = jnp.concatenate([m, m_tilt], axis=1)
    mask_src = jnp.concatenate([mask, mask], axis=2)

    def ln(v, g, b, eps=1e-6):
        mean = v.mean(-1, keepdims=True)
        std = jnp.sqrt(((v - mean) ** 2).sum(-1, keepdims=True) / (v.shape[-1] - 1))
        return g * (v - mean) / (std + eps) + b

    x_norm = ln(x, params["ln_mha_dec_gamma"], params["ln_mha_dec_beta"])
    q = x_norm @ params["wq"].T
    k = m_concat @ params["wk"].T
    v = m_concat @ params["wv"].T
    B, Lq, Dk = q.shape
    Lk = k.shape[1]
    d = Dk // num_heads
    dv = v.shape[-1] // num_heads
    qh = q.reshape(B, Lq, num_heads, d).transpose(0, 2, 1, 3) * (d ** -0.5)
    kh = k.reshape(B, Lk, num_heads, d).transpose(0, 2, 1, 3)
    vh = v.reshape(B, Lk, num_heads, dv).transpose(0, 2, 1, 3)
    logits = jnp.einsum("bhqd,bhkd->bhqk", qh, kh)
    logits = jnp.where(mask_src[:, None, :, :] > 0, -1e18, logits)
    attn_w = logits.sum(1) / num_heads
    w = jax.nn.softmax(logits, -1)
    ctx = jnp.einsum("bhqk,bhkd->bhqd", w, vh).transpose(0, 2, 1, 3).reshape(B, Lq, -1)
    x_res = x + ctx @ params["wo"].T
    x_norm2 = ln(x_res, params["ln_ffn_gamma"], params["ln_ffn_beta"])

    def conv(v_in, wt, bias):
        vp = jnp.pad(v_in, ((0, 0), (2, 0), (0, 0)))
        L = v_in.shape[1]
        return sum(jnp.einsum("blh,oh->blo", vp[:, j:j + L, :], wt[:, :, j])
                   for j in range(3)) + bias

    h1 = jax.nn.relu(conv(x_norm2, params["conv1_w"], params["conv1_b"]))
    h2 = conv(h1, params["conv2_w"], params["conv2_b"])
    return x_res + h2, m_concat, attn_w, mask


# ----------------------------------- main --------------------------------------

if __name__ == "__main__":
    B, Lq, Lm, H = 4, 8, 8, 32
    Dk = Dv = 32
    F = 64
    num_heads = 4

    key = jax.random.PRNGKey(0)
    ks = jax.random.split(key, 12)
    s = 0.05
    x = jax.random.normal(ks[0], (B, Lq, H), jnp.float32)
    m = jax.random.normal(ks[1], (B, Lm, H), jnp.float32)
    m_tilt = jax.random.normal(ks[2], (B, Lm, H), jnp.float32)
    # mask: 1 (True) == padded / masked position, shape [B, 1, Lm]
    mask = jnp.zeros((B, 1, Lm), jnp.int32).at[:, :, Lm - 2:].set(1)
    attention_weight = None  # unused by forward

    params = {
        "ln_mha_dec_gamma": jnp.ones((H,), jnp.float32),
        "ln_mha_dec_beta": jnp.zeros((H,), jnp.float32),
        "wq": s * jax.random.normal(ks[3], (Dk, H), jnp.float32),
        "wk": s * jax.random.normal(ks[4], (Dk, H), jnp.float32),
        "wv": s * jax.random.normal(ks[5], (Dv, H), jnp.float32),
        "wo": s * jax.random.normal(ks[6], (H, Dv), jnp.float32),
        "ln_ffn_gamma": jnp.ones((H,), jnp.float32),
        "ln_ffn_beta": jnp.zeros((H,), jnp.float32),
        "conv1_w": s * jax.random.normal(ks[7], (F, H, 3), jnp.float32),
        "conv1_b": s * jax.random.normal(ks[8], (F,), jnp.float32),
        "conv2_w": s * jax.random.normal(ks[9], (H, F, 3), jnp.float32),
        "conv2_b": s * jax.random.normal(ks[10], (H,), jnp.float32),
    }

    inputs = (x, m, m_tilt, attention_weight, mask)
    y, m_cat, attn_w, mask_out = complex_emo_attention_layer(
        inputs, params, num_heads, batch_block=2)
    jax.block_until_ready((y, m_cat, attn_w))

    y_exp, m_exp, attn_exp, _ = reference_forward(inputs, params, num_heads)
    assert y.shape == (B, Lq, H) and attn_w.shape == (B, Lq, 2 * Lm)
    # bf16 MXU operands with f32 accumulation -> slightly looser tolerance than pure f32
    assert jnp.allclose(y, y_exp, rtol=2e-2, atol=2e-2)
    assert jnp.allclose(attn_w, attn_exp, rtol=2e-2, atol=2e-2)
    assert jnp.allclose(m_cat, m_exp)

    print("KERNEL_OK")
</pallas_src>

<mosaic_0001>
module attributes {stable_mosaic.version = 11 : i64} {
  func.func @_emo_attention_kernel(%arg0: i32, %arg1: memref<2x8x32xf32, #tpu.memory_space<vmem>>, %arg2: memref<2x8x32xf32, #tpu.memory_space<vmem>>, %arg3: memref<2x8x32xf32, #tpu.memory_space<vmem>>, %arg4: memref<2x1x8xi32, #tpu.memory_space<vmem>>, %arg5: memref<1x32xf32, #tpu.memory_space<vmem>>, %arg6: memref<1x32xf32, #tpu.memory_space<vmem>>, %arg7: memref<32x32xbf16, #tpu.memory_space<vmem>>, %arg8: memref<32x32xbf16, #tpu.memory_space<vmem>>, %arg9: memref<32x32xbf16, #tpu.memory_space<vmem>>, %arg10: memref<32x32xbf16, #tpu.memory_space<vmem>>, %arg11: memref<1x32xf32, #tpu.memory_space<vmem>>, %arg12: memref<1x32xf32, #tpu.memory_space<vmem>>, %arg13: memref<96x64xbf16, #tpu.memory_space<vmem>>, %arg14: memref<1x64xf32, #tpu.memory_space<vmem>>, %arg15: memref<192x32xbf16, #tpu.memory_space<vmem>>, %arg16: memref<1x32xf32, #tpu.memory_space<vmem>>, %arg17: memref<2x8x32xf32, #tpu.memory_space<vmem>>, %arg18: memref<2x8x16xf32, #tpu.memory_space<vmem>>) attributes {dimension_semantics = [#tpu.dimension_semantics<parallel>], iteration_bounds = array<i64: 2>, scalar_prefetch = 0 : i64, scratch_operands = 0 : i64, tpu.core_type = #tpu.core_type<tc>, window_params = [{transform_indices = @transform_0, window_bounds = array<i64: 2, 8, 32>}, {transform_indices = @transform_1, window_bounds = array<i64: 2, 8, 32>}, {transform_indices = @transform_2, window_bounds = array<i64: 2, 8, 32>}, {transform_indices = @transform_3, window_bounds = array<i64: 2, 1, 8>}, {pipeline_mode = #tpu.pipeline_mode<synchronous>, transform_indices = @transform_4, window_bounds = array<i64: 1, 32>}, {pipeline_mode = #tpu.pipeline_mode<synchronous>, transform_indices = @transform_5, window_bounds = array<i64: 1, 32>}, {pipeline_mode = #tpu.pipeline_mode<synchronous>, transform_indices = @transform_6, window_bounds = array<i64: 32, 32>}, {pipeline_mode = #tpu.pipeline_mode<synchronous>, transform_indices = @transform_7, window_bounds = array<i64: 32, 32>}, {pipeline_mode = #tpu.pipeline_mode<synchronous>, transform_indices = @transform_8, window_bounds = array<i64: 32, 32>}, {pipeline_mode = #tpu.pipeline_mode<synchronous>, transform_indices = @transform_9, window_bounds = array<i64: 32, 32>}, {pipeline_mode = #tpu.pipeline_mode<synchronous>, transform_indices = @transform_10, window_bounds = array<i64: 1, 32>}, {pipeline_mode = #tpu.pipeline_mode<synchronous>, transform_indices = @transform_11, window_bounds = array<i64: 1, 32>}, {pipeline_mode = #tpu.pipeline_mode<synchronous>, transform_indices = @transform_12, window_bounds = array<i64: 96, 64>}, {pipeline_mode = #tpu.pipeline_mode<synchronous>, transform_indices = @transform_13, window_bounds = array<i64: 1, 64>}, {pipeline_mode = #tpu.pipeline_mode<synchronous>, transform_indices = @transform_14, window_bounds = array<i64: 192, 32>}, {pipeline_mode = #tpu.pipeline_mode<synchronous>, transform_indices = @transform_15, window_bounds = array<i64: 1, 32>}, {transform_indices = @transform_16, window_bounds = array<i64: 2, 8, 32>}, {transform_indices = @transform_17, window_bounds = array<i64: 2, 8, 16>}]} {
    %c0 = arith.constant 0 : index
    %c0_0 = arith.constant 0 : index
    %c0_1 = arith.constant 0 : index
    %0 = vector.load %arg1[%c0, %c0_0, %c0_1] : memref<2x8x32xf32, #tpu.memory_space<vmem>>, vector<2x8x32xf32>
    %1 = vector.shape_cast %0 : vector<2x8x32xf32> to vector<16x32xf32>
    %c0_2 = arith.constant 0 : index
    %c0_3 = arith.constant 0 : index
    %c0_4 = arith.constant 0 : index
    %2 = vector.load %arg2[%c0_2, %c0_3, %c0_4] : memref<2x8x32xf32, #tpu.memory_space<vmem>>, vector<2x8x32xf32>
    %c0_5 = arith.constant 0 : index
    %c0_6 = arith.constant 0 : index
    %c0_7 = arith.constant 0 : index
    %3 = vector.load %arg3[%c0_5, %c0_6, %c0_7] : memref<2x8x32xf32, #tpu.memory_space<vmem>>, vector<2x8x32xf32>
    %4 = tpu.concatenate %2, %3 in 1 : vector<2x8x32xf32>, vector<2x8x32xf32> -> vector<2x16x32xf32>
    %5 = vector.shape_cast %4 : vector<2x16x32xf32> to vector<32x32xf32>
    %6 = arith.truncf %5 : vector<32x32xf32> to vector<32x32xbf16>
    %c0_8 = arith.constant 0 : index
    %c0_9 = arith.constant 0 : index
    %c0_10 = arith.constant 0 : index
    %7 = vector.load %arg4[%c0_8, %c0_9, %c0_10] : memref<2x1x8xi32, #tpu.memory_space<vmem>>, vector<2x1x8xi32>
    %c0_11 = arith.constant 0 : index
    %c0_12 = arith.constant 0 : index
    %c0_13 = arith.constant 0 : index
    %8 = vector.load %arg4[%c0_11, %c0_12, %c0_13] : memref<2x1x8xi32, #tpu.memory_space<vmem>>, vector<2x1x8xi32>
    %9 = tpu.concatenate %7, %8 in 2 : vector<2x1x8xi32>, vector<2x1x8xi32> -> vector<2x1x16xi32>
    %c0_i32 = arith.constant 0 : i32
    %10 = vector.broadcast %c0_i32 : i32 to vector<2x1x16xi32>
    %11 = arith.cmpi sgt, %9, %10 : vector<2x1x16xi32>
    %c0_14 = arith.constant 0 : index
    %c0_15 = arith.constant 0 : index
    %12 = vector.load %arg5[%c0_14, %c0_15] : memref<1x32xf32, #tpu.memory_space<vmem>>, vector<1x32xf32>
    %c0_16 = arith.constant 0 : index
    %c0_17 = arith.constant 0 : index
    %13 = vector.load %arg6[%c0_16, %c0_17] : memref<1x32xf32, #tpu.memory_space<vmem>>, vector<1x32xf32>
    %cst = arith.constant dense<0.000000e+00> : vector<16xf32>
    %14 = vector.multi_reduction <add>, %1, %cst [1] : vector<16x32xf32> to vector<16xf32>
    %15 = vector.shape_cast %14 : vector<16xf32> to vector<16x1xf32>
    %cst_18 = arith.constant 3.200000e+01 : f32
    %16 = vector.broadcast %cst_18 : f32 to vector<16x1xf32>
    %17 = arith.divf %15, %16 : vector<16x1xf32>
    %18 = vector.broadcast %17 : vector<16x1xf32> to vector<16x32xf32>
    %19 = arith.subf %1, %18 : vector<16x32xf32>
    %20 = arith.mulf %19, %19 : vector<16x32xf32>
    %cst_19 = arith.constant dense<0.000000e+00> : vector<16xf32>
    %21 = vector.multi_reduction <add>, %20, %cst_19 [1] : vector<16x32xf32> to vector<16xf32>
    %22 = vector.shape_cast %21 : vector<16xf32> to vector<16x1xf32>
    %cst_20 = arith.constant 3.100000e+01 : f32
    %23 = vector.broadcast %cst_20 : f32 to vector<16x1xf32>
    %24 = arith.divf %22, %23 : vector<16x1xf32>
    %25 = vector.broadcast %17 : vector<16x1xf32> to vector<16x32xf32>
    %26 = arith.subf %1, %25 : vector<16x32xf32>
    %27 = vector.broadcast %12 : vector<1x32xf32> to vector<16x32xf32>
    %28 = arith.mulf %27, %26 : vector<16x32xf32>
    %29 = math.sqrt %24 : vector<16x1xf32>
    %cst_21 = arith.constant 9.99999997E-7 : f32
    %30 = vector.broadcast %cst_21 : f32 to vector<16x1xf32>
    %31 = arith.addf %29, %30 : vector<16x1xf32>
    %32 = vector.broadcast %31 : vector<16x1xf32> to vector<16x32xf32>
    %33 = arith.divf %28, %32 : vector<16x32xf32>
    %34 = vector.broadcast %13 : vector<1x32xf32> to vector<16x32xf32>
    %35 = arith.addf %33, %34 : vector<16x32xf32>
    %36 = arith.truncf %35 : vector<16x32xf32> to vector<16x32xbf16>
    %c0_22 = arith.constant 0 : index
    %c0_23 = arith.constant 0 : index
    %37 = vector.load %arg7[%c0_22, %c0_23] : memref<32x32xbf16, #tpu.memory_space<vmem>>, vector<32x32xbf16>
    %cst_24 = arith.constant dense<0.000000e+00> : vector<16x32xf32>
    %38 = tpu.matmul %36, %37, %cst_24 {dimension_numbers = #tpu.dot_dimension_numbers<[1], [0], [0], [1], [0, 0, 1, 1], [], []>} : vector<16x32xbf16>, vector<32x32xbf16>, vector<16x32xf32> -> vector<16x32xf32>
    %c0_25 = arith.constant 0 : index
    %c0_26 = arith.constant 0 : index
    %39 = vector.load %arg8[%c0_25, %c0_26] : memref<32x32xbf16, #tpu.memory_space<vmem>>, vector<32x32xbf16>
    %cst_27 = arith.constant dense<0.000000e+00> : vector<32x32xf32>
    %40 = tpu.matmul %6, %39, %cst_27 {dimension_numbers = #tpu.dot_dimension_numbers<[1], [0], [0], [1], [0, 0, 1, 1], [], []>} : vector<32x32xbf16>, vector<32x32xbf16>, vector<32x32xf32> -> vector<32x32xf32>
    %c0_28 = arith.constant 0 : index
    %c0_29 = arith.constant 0 : index
    %41 = vector.load %arg9[%c0_28, %c0_29] : memref<32x32xbf16, #tpu.memory_space<vmem>>, vector<32x32xbf16>
    %cst_30 = arith.constant dense<0.000000e+00> : vector<32x32xf32>
    %42 = tpu.matmul %6, %41, %cst_30 {dimension_numbers = #tpu.dot_dimension_numbers<[1], [0], [0], [1], [0, 0, 1, 1], [], []>} : vector<32x32xbf16>, vector<32x32xbf16>, vector<32x32xf32> -> vector<32x32xf32>
    %43 = vector.shape_cast %38 : vector<16x32xf32> to vector<2x8x32xf32>
    %44 = vector.shape_cast %40 : vector<32x32xf32> to vector<2x16x32xf32>
    %45 = vector.shape_cast %42 : vector<32x32xf32> to vector<2x16x32xf32>
    %cst_31 = arith.constant 0.000000e+00 : f32
    %46 = vector.broadcast %cst_31 : f32 to vector<2x8x16xf32>
    %47 = vector.extract_strided_slice %43 {offsets = [0, 0, 0], sizes = [2, 8, 8], strides = [1, 1, 1]} : vector<2x8x32xf32> to vector<2x8x8xf32>
    %cst_32 = arith.constant 0.353553385 : f32
    %48 = vector.broadcast %cst_32 : f32 to vector<2x8x8xf32>
    %49 = arith.mulf %47, %48 : vector<2x8x8xf32>
    %50 = arith.truncf %49 : vector<2x8x8xf32> to vector<2x8x8xbf16>
    %51 = vector.extract_strided_slice %44 {offsets = [0, 0, 0], sizes = [2, 16, 8], strides = [1, 1, 1]} : vector<2x16x32xf32> to vector<2x16x8xf32>
    %52 = arith.truncf %51 : vector<2x16x8xf32> to vector<2x16x8xbf16>
    %53 = vector.extract_strided_slice %45 {offsets = [0, 0, 0], sizes = [2, 16, 8], strides = [1, 1, 1]} : vector<2x16x32xf32> to vector<2x16x8xf32>
    %54 = arith.truncf %53 : vector<2x16x8xf32> to vector<2x16x8xbf16>
    %cst_33 = arith.constant dense<0.000000e+00> : vector<2x8x16xf32>
    %55 = tpu.matmul %50, %52, %cst_33 {dimension_numbers = #tpu.dot_dimension_numbers<[2], [2], [1], [1], [0, 0, 0, 1, 1, 1], [0], [0]>} : vector<2x8x8xbf16>, vector<2x16x8xbf16>, vector<2x8x16xf32> -> vector<2x8x16xf32>
    %cst_34 = arith.constant -9.99999984E+17 : f32
    %56 = vector.shape_cast %11 : vector<2x1x16xi1> to vector<2x1x16xi1>
    %57 = vector.broadcast %56 : vector<2x1x16xi1> to vector<2x8x16xi1>
    %58 = vector.broadcast %cst_34 : f32 to vector<2x8x16xf32>
    %59 = arith.select %57, %58, %55 : vector<2x8x16xi1>, vector<2x8x16xf32>
    %60 = arith.addf %46, %59 : vector<2x8x16xf32>
    %cst_35 = arith.constant dense<0xFF800000> : vector<2x8xf32>
    %61 = vector.multi_reduction <maximumf>, %59, %cst_35 [2] : vector<2x8x16xf32> to vector<2x8xf32>
    %62 = vector.shape_cast %61 : vector<2x8xf32> to vector<2x8x1xf32>
    %63 = vector.broadcast %62 : vector<2x8x1xf32> to vector<2x8x16xf32>
    %64 = arith.subf %59, %63 : vector<2x8x16xf32>
    %65 = math.exp %64 : vector<2x8x16xf32>
    %cst_36 = arith.constant dense<0.000000e+00> : vector<2x8xf32>
    %66 = vector.multi_reduction <add>, %65, %cst_36 [2] : vector<2x8x16xf32> to vector<2x8xf32>
    %67 = vector.shape_cast %66 : vector<2x8xf32> to vector<2x8x1xf32>
    %68 = tpu.reciprocal %67 {approx = true} : vector<2x8x1xf32> -> vector<2x8x1xf32>
    %69 = vector.broadcast %68 : vector<2x8x1xf32> to vector<2x8x16xf32>
    %70 = arith.mulf %65, %69 : vector<2x8x16xf32>
    %71 = arith.truncf %70 : vector<2x8x16xf32> to vector<2x8x16xbf16>
    %cst_37 = arith.constant dense<0.000000e+00> : vector<2x8x8xf32>
    %72 = tpu.matmul %71, %54, %cst_37 {dimension_numbers = #tpu.dot_dimension_numbers<[2], [1], [1], [2], [0, 0, 0, 1, 1, 2], [0], [0]>} : vector<2x8x16xbf16>, vector<2x16x8xbf16>, vector<2x8x8xf32> -> vector<2x8x8xf32>
    %73 = vector.extract_strided_slice %43 {offsets = [0, 0, 8], sizes = [2, 8, 8], strides = [1, 1, 1]} : vector<2x8x32xf32> to vector<2x8x8xf32>
    %cst_38 = arith.constant 0.353553385 : f32
    %74 = vector.broadcast %cst_38 : f32 to vector<2x8x8xf32>
    %75 = arith.mulf %73, %74 : vector<2x8x8xf32>
    %76 = arith.truncf %75 : vector<2x8x8xf32> to vector<2x8x8xbf16>
    %77 = vector.extract_strided_slice %44 {offsets = [0, 0, 8], sizes = [2, 16, 8], strides = [1, 1, 1]} : vector<2x16x32xf32> to vector<2x16x8xf32>
    %78 = arith.truncf %77 : vector<2x16x8xf32> to vector<2x16x8xbf16>
    %79 = vector.extract_strided_slice %45 {offsets = [0, 0, 8], sizes = [2, 16, 8], strides = [1, 1, 1]} : vector<2x16x32xf32> to vector<2x16x8xf32>
    %80 = arith.truncf %79 : vector<2x16x8xf32> to vector<2x16x8xbf16>
    %cst_39 = arith.constant dense<0.000000e+00> : vector<2x8x16xf32>
    %81 = tpu.matmul %76, %78, %cst_39 {dimension_numbers = #tpu.dot_dimension_numbers<[2], [2], [1], [1], [0, 0, 0, 1, 1, 1], [0], [0]>} : vector<2x8x8xbf16>, vector<2x16x8xbf16>, vector<2x8x16xf32> -> vector<2x8x16xf32>
    %cst_40 = arith.constant -9.99999984E+17 : f32
    %82 = vector.shape_cast %11 : vector<2x1x16xi1> to vector<2x1x16xi1>
    %83 = vector.broadcast %82 : vector<2x1x16xi1> to vector<2x8x16xi1>
    %84 = vector.broadcast %cst_40 : f32 to vector<2x8x16xf32>
    %85 = arith.select %83, %84, %81 : vector<2x8x16xi1>, vector<2x8x16xf32>
    %86 = arith.addf %60, %85 : vector<2x8x16xf32>
    %cst_41 = arith.constant dense<0xFF800000> : vector<2x8xf32>
    %87 = vector.multi_reduction <maximumf>, %85, %cst_41 [2] : vector<2x8x16xf32> to vector<2x8xf32>
    %88 = vector.shape_cast %87 : vector<2x8xf32> to vector<2x8x1xf32>
    %89 = vector.broadcast %88 : vector<2x8x1xf32> to vector<2x8x16xf32>
    %90 = arith.subf %85, %89 : vector<2x8x16xf32>
    %91 = math.exp %90 : vector<2x8x16xf32>
    %cst_42 = arith.constant dense<0.000000e+00> : vector<2x8xf32>
    %92 = vector.multi_reduction <add>, %91, %cst_42 [2] : vector<2x8x16xf32> to vector<2x8xf32>
    %93 = vector.shape_cast %92 : vector<2x8xf32> to vector<2x8x1xf32>
    %94 = tpu.reciprocal %93 {approx = true} : vector<2x8x1xf32> -> vector<2x8x1xf32>
    %95 = vector.broadcast %94 : vector<2x8x1xf32> to vector<2x8x16xf32>
    %96 = arith.mulf %91, %95 : vector<2x8x16xf32>
    %97 = arith.truncf %96 : vector<2x8x16xf32> to vector<2x8x16xbf16>
    %cst_43 = arith.constant dense<0.000000e+00> : vector<2x8x8xf32>
    %98 = tpu.matmul %97, %80, %cst_43 {dimension_numbers = #tpu.dot_dimension_numbers<[2], [1], [1], [2], [0, 0, 0, 1, 1, 2], [0], [0]>} : vector<2x8x16xbf16>, vector<2x16x8xbf16>, vector<2x8x8xf32> -> vector<2x8x8xf32>
    %99 = vector.extract_strided_slice %43 {offsets = [0, 0, 16], sizes = [2, 8, 8], strides = [1, 1, 1]} : vector<2x8x32xf32> to vector<2x8x8xf32>
    %cst_44 = arith.constant 0.353553385 : f32
    %100 = vector.broadcast %cst_44 : f32 to vector<2x8x8xf32>
    %101 = arith.mulf %99, %100 : vector<2x8x8xf32>
    %102 = arith.truncf %101 : vector<2x8x8xf32> to vector<2x8x8xbf16>
    %103 = vector.extract_strided_slice %44 {offsets = [0, 0, 16], sizes = [2, 16, 8], strides = [1, 1, 1]} : vector<2x16x32xf32> to vector<2x16x8xf32>
    %104 = arith.truncf %103 : vector<2x16x8xf32> to vector<2x16x8xbf16>
    %105 = vector.extract_strided_slice %45 {offsets = [0, 0, 16], sizes = [2, 16, 8], strides = [1, 1, 1]} : vector<2x16x32xf32> to vector<2x16x8xf32>
    %106 = arith.truncf %105 : vector<2x16x8xf32> to vector<2x16x8xbf16>
    %cst_45 = arith.constant dense<0.000000e+00> : vector<2x8x16xf32>
    %107 = tpu.matmul %102, %104, %cst_45 {dimension_numbers = #tpu.dot_dimension_numbers<[2], [2], [1], [1], [0, 0, 0, 1, 1, 1], [0], [0]>} : vector<2x8x8xbf16>, vector<2x16x8xbf16>, vector<2x8x16xf32> -> vector<2x8x16xf32>
    %cst_46 = arith.constant -9.99999984E+17 : f32
    %108 = vector.shape_cast %11 : vector<2x1x16xi1> to vector<2x1x16xi1>
    %109 = vector.broadcast %108 : vector<2x1x16xi1> to vector<2x8x16xi1>
    %110 = vector.broadcast %cst_46 : f32 to vector<2x8x16xf32>
    %111 = arith.select %109, %110, %107 : vector<2x8x16xi1>, vector<2x8x16xf32>
    %112 = arith.addf %86, %111 : vector<2x8x16xf32>
    %cst_47 = arith.constant dense<0xFF800000> : vector<2x8xf32>
    %113 = vector.multi_reduction <maximumf>, %111, %cst_47 [2] : vector<2x8x16xf32> to vector<2x8xf32>
    %114 = vector.shape_cast %113 : vector<2x8xf32> to vector<2x8x1xf32>
    %115 = vector.broadcast %114 : vector<2x8x1xf32> to vector<2x8x16xf32>
    %116 = arith.subf %111, %115 : vector<2x8x16xf32>
    %117 = math.exp %116 : vector<2x8x16xf32>
    %cst_48 = arith.constant dense<0.000000e+00> : vector<2x8xf32>
    %118 = vector.multi_reduction <add>, %117, %cst_48 [2] : vector<2x8x16xf32> to vector<2x8xf32>
    %119 = vector.shape_cast %118 : vector<2x8xf32> to vector<2x8x1xf32>
    %120 = tpu.reciprocal %119 {approx = true} : vector<2x8x1xf32> -> vector<2x8x1xf32>
    %121 = vector.broadcast %120 : vector<2x8x1xf32> to vector<2x8x16xf32>
    %122 = arith.mulf %117, %121 : vector<2x8x16xf32>
    %123 = arith.truncf %122 : vector<2x8x16xf32> to vector<2x8x16xbf16>
    %cst_49 = arith.constant dense<0.000000e+00> : vector<2x8x8xf32>
    %124 = tpu.matmul %123, %106, %cst_49 {dimension_numbers = #tpu.dot_dimension_numbers<[2], [1], [1], [2], [0, 0, 0, 1, 1, 2], [0], [0]>} : vector<2x8x16xbf16>, vector<2x16x8xbf16>, vector<2x8x8xf32> -> vector<2x8x8xf32>
    %125 = vector.extract_strided_slice %43 {offsets = [0, 0, 24], sizes = [2, 8, 8], strides = [1, 1, 1]} : vector<2x8x32xf32> to vector<2x8x8xf32>
    %cst_50 = arith.constant 0.353553385 : f32
    %126 = vector.broadcast %cst_50 : f32 to vector<2x8x8xf32>
    %127 = arith.mulf %125, %126 : vector<2x8x8xf32>
    %128 = arith.truncf %127 : vector<2x8x8xf32> to vector<2x8x8xbf16>
    %129 = vector.extract_strided_slice %44 {offsets = [0, 0, 24], sizes = [2, 16, 8], strides = [1, 1, 1]} : vector<2x16x32xf32> to vector<2x16x8xf32>
    %130 = arith.truncf %129 : vector<2x16x8xf32> to vector<2x16x8xbf16>
    %131 = vector.extract_strided_slice %45 {offsets = [0, 0, 24], sizes = [2, 16, 8], strides = [1, 1, 1]} : vector<2x16x32xf32> to vector<2x16x8xf32>
    %132 = arith.truncf %131 : vector<2x16x8xf32> to vector<2x16x8xbf16>
    %cst_51 = arith.constant dense<0.000000e+00> : vector<2x8x16xf32>
    %133 = tpu.matmul %128, %130, %cst_51 {dimension_numbers = #tpu.dot_dimension_numbers<[2], [2], [1], [1], [0, 0, 0, 1, 1, 1], [0], [0]>} : vector<2x8x8xbf16>, vector<2x16x8xbf16>, vector<2x8x16xf32> -> vector<2x8x16xf32>
    %cst_52 = arith.constant -9.99999984E+17 : f32
    %134 = vector.shape_cast %11 : vector<2x1x16xi1> to vector<2x1x16xi1>
    %135 = vector.broadcast %134 : vector<2x1x16xi1> to vector<2x8x16xi1>
    %136 = vector.broadcast %cst_52 : f32 to vector<2x8x16xf32>
    %137 = arith.select %135, %136, %133 : vector<2x8x16xi1>, vector<2x8x16xf32>
    %138 = arith.addf %112, %137 : vector<2x8x16xf32>
    %cst_53 = arith.constant dense<0xFF800000> : vector<2x8xf32>
    %139 = vector.multi_reduction <maximumf>, %137, %cst_53 [2] : vector<2x8x16xf32> to vector<2x8xf32>
    %140 = vector.shape_cast %139 : vector<2x8xf32> to vector<2x8x1xf32>
    %141 = vector.broadcast %140 : vector<2x8x1xf32> to vector<2x8x16xf32>
    %142 = arith.subf %137, %141 : vector<2x8x16xf32>
    %143 = math.exp %142 : vector<2x8x16xf32>
    %cst_54 = arith.constant dense<0.000000e+00> : vector<2x8xf32>
    %144 = vector.multi_reduction <add>, %143, %cst_54 [2] : vector<2x8x16xf32> to vector<2x8xf32>
    %145 = vector.shape_cast %144 : vector<2x8xf32> to vector<2x8x1xf32>
    %146 = tpu.reciprocal %145 {approx = true} : vector<2x8x1xf32> -> vector<2x8x1xf32>
    %147 = vector.broadcast %146 : vector<2x8x1xf32> to vector<2x8x16xf32>
    %148 = arith.mulf %143, %147 : vector<2x8x16xf32>
    %149 = arith.truncf %148 : vector<2x8x16xf32> to vector<2x8x16xbf16>
    %cst_55 = arith.constant dense<0.000000e+00> : vector<2x8x8xf32>
    %150 = tpu.matmul %149, %132, %cst_55 {dimension_numbers = #tpu.dot_dimension_numbers<[2], [1], [1], [2], [0, 0, 0, 1, 1, 2], [0], [0]>} : vector<2x8x16xbf16>, vector<2x16x8xbf16>, vector<2x8x8xf32> -> vector<2x8x8xf32>
    %151 = tpu.concatenate %72, %98, %124, %150 in 2 : vector<2x8x8xf32>, vector<2x8x8xf32>, vector<2x8x8xf32>, vector<2x8x8xf32> -> vector<2x8x32xf32>
    %cst_56 = arith.constant 2.500000e-01 : f32
    %152 = vector.broadcast %cst_56 : f32 to vector<2x8x16xf32>
    %153 = arith.mulf %138, %152 : vector<2x8x16xf32>
    %c0_57 = arith.constant 0 : index
    %c0_58 = arith.constant 0 : index
    %c0_59 = arith.constant 0 : index
    %154 = vector.load %arg18[%c0_57, %c0_58, %c0_59] : memref<2x8x16xf32, #tpu.memory_space<vmem>>, vector<2x8x16xf32>
    tpu.vector_store %arg18[%c0_57, %c0_58, %c0_59], %153 {strides = array<i32>} : memref<2x8x16xf32, #tpu.memory_space<vmem>>, vector<2x8x16xf32>,
    %155 = vector.shape_cast %151 : vector<2x8x32xf32> to vector<16x32xf32>
    %156 = arith.truncf %155 : vector<16x32xf32> to vector<16x32xbf16>
    %c0_60 = arith.constant 0 : index
    %c0_61 = arith.constant 0 : index
    %157 = vector.load %arg10[%c0_60, %c0_61] : memref<32x32xbf16, #tpu.memory_space<vmem>>, vector<32x32xbf16>
    %cst_62 = arith.constant dense<0.000000e+00> : vector<16x32xf32>
    %158 = tpu.matmul %156, %157, %cst_62 {dimension_numbers = #tpu.dot_dimension_numbers<[1], [0], [0], [1], [0, 0, 1, 1], [], []>} : vector<16x32xbf16>, vector<32x32xbf16>, vector<16x32xf32> -> vector<16x32xf32>
    %159 = arith.addf %1, %158 : vector<16x32xf32>
    %c0_63 = arith.constant 0 : index
    %c0_64 = arith.constant 0 : index
    %160 = vector.load %arg11[%c0_63, %c0_64] : memref<1x32xf32, #tpu.memory_space<vmem>>, vector<1x32xf32>
    %c0_65 = arith.constant 0 : index
    %c0_66 = arith.constant 0 : index
    %161 = vector.load %arg12[%c0_65, %c0_66] : memref<1x32xf32, #tpu.memory_space<vmem>>, vector<1x32xf32>
    %cst_67 = arith.constant dense<0.000000e+00> : vector<16xf32>
    %162 = vector.multi_reduction <add>, %159, %cst_67 [1] : vector<16x32xf32> to vector<16xf32>
    %163 = vector.shape_cast %162 : vector<16xf32> to vector<16x1xf32>
    %cst_68 = arith.constant 3.200000e+01 : f32
    %164 = vector.broadcast %cst_68 : f32 to vector<16x1xf32>
    %165 = arith.divf %163, %164 : vector<16x1xf32>
    %166 = vector.broadcast %165 : vector<16x1xf32> to vector<16x32xf32>
    %167 = arith.subf %159, %166 : vector<16x32xf32>
    %168 = arith.mulf %167, %167 : vector<16x32xf32>
    %cst_69 = arith.constant dense<0.000000e+00> : vector<16xf32>
    %169 = vector.multi_reduction <add>, %168, %cst_69 [1] : vector<16x32xf32> to vector<16xf32>
    %170 = vector.shape_cast %169 : vector<16xf32> to vector<16x1xf32>
    %cst_70 = arith.constant 3.100000e+01 : f32
    %171 = vector.broadcast %cst_70 : f32 to vector<16x1xf32>
    %172 = arith.divf %170, %171 : vector<16x1xf32>
    %173 = vector.broadcast %165 : vector<16x1xf32> to vector<16x32xf32>
    %174 = arith.subf %159, %173 : vector<16x32xf32>
    %175 = vector.broadcast %160 : vector<1x32xf32> to vector<16x32xf32>
    %176 = arith.mulf %175, %174 : vector<16x32xf32>
    %177 = math.sqrt %172 : vector<16x1xf32>
    %cst_71 = arith.constant 9.99999997E-7 : f32
    %178 = vector.broadcast %cst_71 : f32 to vector<16x1xf32>
    %179 = arith.addf %177, %178 : vector<16x1xf32>
    %180 = vector.broadcast %179 : vector<16x1xf32> to vector<16x32xf32>
    %181 = arith.divf %176, %180 : vector<16x32xf32>
    %182 = vector.broadcast %161 : vector<1x32xf32> to vector<16x32xf32>
    %183 = arith.addf %181, %182 : vector<16x32xf32>
    %184 = vector.shape_cast %183 : vector<16x32xf32> to vector<2x8x32xf32>
    %c0_72 = arith.constant 0 : index
    %c0_73 = arith.constant 0 : index
    %185 = vector.load %arg14[%c0_72, %c0_73] : memref<1x64xf32, #tpu.memory_space<vmem>>, vector<1x64xf32>
    %cst_74 = arith.constant 0.000000e+00 : f32
    %186 = vector.broadcast %cst_74 : f32 to vector<2x2x32xf32>
    %187 = vector.extract_strided_slice %184 {offsets = [0, 0, 0], sizes = [2, 6, 32], strides = [1, 1, 1]} : vector<2x8x32xf32> to vector<2x6x32xf32>
    %188 = tpu.concatenate %186, %187 in 1 : vector<2x2x32xf32>, vector<2x6x32xf32> -> vector<2x8x32xf32>
    %cst_75 = arith.constant 0.000000e+00 : f32
    %189 = vector.broadcast %cst_75 : f32 to vector<2x1x32xf32>
    %190 = vector.extract_strided_slice %184 {offsets = [0, 0, 0], sizes = [2, 7, 32], strides = [1, 1, 1]} : vector<2x8x32xf32> to vector<2x7x32xf32>
    %191 = tpu.concatenate %189, %190 in 1 : vector<2x1x32xf32>, vector<2x7x32xf32> -> vector<2x8x32xf32>
    %192 = tpu.concatenate %188, %191, %184 in 2 : vector<2x8x32xf32>, vector<2x8x32xf32>, vector<2x8x32xf32> -> vector<2x8x96xf32>
    %193 = vector.shape_cast %192 : vector<2x8x96xf32> to vector<16x96xf32>
    %194 = arith.truncf %193 : vector<16x96xf32> to vector<16x96xbf16>
    %c0_76 = arith.constant 0 : index
    %c0_77 = arith.constant 0 : index
    %195 = vector.load %arg13[%c0_76, %c0_77] : memref<96x64xbf16, #tpu.memory_space<vmem>>, vector<96x64xbf16>
    %cst_78 = arith.constant dense<0.000000e+00> : vector<16x64xf32>
    %196 = tpu.matmul %194, %195, %cst_78 {dimension_numbers = #tpu.dot_dimension_numbers<[1], [0], [0], [1], [0, 0, 1, 1], [], []>} : vector<16x96xbf16>, vector<96x64xbf16>, vector<16x64xf32> -> vector<16x64xf32>
    %197 = vector.broadcast %185 : vector<1x64xf32> to vector<16x64xf32>
    %198 = arith.addf %196, %197 : vector<16x64xf32>
    %cst_79 = arith.constant 0.000000e+00 : f32
    %199 = vector.broadcast %cst_79 : f32 to vector<16x64xf32>
    %200 = arith.maximumf %198, %199 : vector<16x64xf32>
    %201 = vector.shape_cast %200 : vector<16x64xf32> to vector<2x8x64xf32>
    %c0_80 = arith.constant 0 : index
    %c0_81 = arith.constant 0 : index
    %202 = vector.load %arg16[%c0_80, %c0_81] : memref<1x32xf32, #tpu.memory_space<vmem>>, vector<1x32xf32>
    %cst_82 = arith.constant 0.000000e+00 : f32
    %203 = vector.broadcast %cst_82 : f32 to vector<2x2x64xf32>
    %204 = vector.extract_strided_slice %201 {offsets = [0, 0, 0], sizes = [2, 6, 64], strides = [1, 1, 1]} : vector<2x8x64xf32> to vector<2x6x64xf32>
    %205 = tpu.concatenate %203, %204 in 1 : vector<2x2x64xf32>, vector<2x6x64xf32> -> vector<2x8x64xf32>
    %cst_83 = arith.constant 0.000000e+00 : f32
    %206 = vector.broadcast %cst_83 : f32 to vector<2x1x64xf32>
    %207 = vector.extract_strided_slice %201 {offsets = [0, 0, 0], sizes = [2, 7, 64], strides = [1, 1, 1]} : vector<2x8x64xf32> to vector<2x7x64xf32>
    %208 = tpu.concatenate %206, %207 in 1 : vector<2x1x64xf32>, vector<2x7x64xf32> -> vector<2x8x64xf32>
    %209 = tpu.concatenate %205, %208, %201 in 2 : vector<2x8x64xf32>, vector<2x8x64xf32>, vector<2x8x64xf32> -> vector<2x8x192xf32>
    %210 = vector.shape_cast %209 : vector<2x8x192xf32> to vector<16x192xf32>
    %211 = arith.truncf %210 : vector<16x192xf32> to vector<16x192xbf16>
    %c0_84 = arith.constant 0 : index
    %c0_85 = arith.constant 0 : index
    %212 = vector.load %arg15[%c0_84, %c0_85] : memref<192x32xbf16, #tpu.memory_space<vmem>>, vector<192x32xbf16>
    %cst_86 = arith.constant dense<0.000000e+00> : vector<16x32xf32>
    %213 = tpu.matmul %211, %212, %cst_86 {dimension_numbers = #tpu.dot_dimension_numbers<[1], [0], [0], [1], [0, 0, 1, 1], [], []>} : vector<16x192xbf16>, vector<192x32xbf16>, vector<16x32xf32> -> vector<16x32xf32>
    %214 = vector.broadcast %202 : vector<1x32xf32> to vector<16x32xf32>
    %215 = arith.addf %213, %214 : vector<16x32xf32>
    %216 = arith.addf %159, %215 : vector<16x32xf32>
    %217 = vector.shape_cast %216 : vector<16x32xf32> to vector<2x8x32xf32>
    %c0_87 = arith.constant 0 : index
    %c0_88 = arith.constant 0 : index
    %c0_89 = arith.constant 0 : index
    %218 = vector.load %arg17[%c0_87, %c0_88, %c0_89] : memref<2x8x32xf32, #tpu.memory_space<vmem>>, vector<2x8x32xf32>
    tpu.vector_store %arg17[%c0_87, %c0_88, %c0_89], %217 {strides = array<i32>} : memref<2x8x32xf32, #tpu.memory_space<vmem>>, vector<2x8x32xf32>,
    return
  }
  func.func @transform_0(%arg0: i32) -> (i32, i32, i32) {
    %c0_i32 = arith.constant 0 : i32
    %c0_i32_0 = arith.constant 0 : i32
    %c0_i32_1 = arith.constant 0 : i32
    return %arg0, %c0_i32, %c0_i32_0 : i32, i32, i32
  }
  func.func @transform_1(%arg0: i32) -> (i32, i32, i32) {
    %c0_i32 = arith.constant 0 : i32
    %c0_i32_0 = arith.constant 0 : i32
    %c0_i32_1 = arith.constant 0 : i32
    return %arg0, %c0_i32, %c0_i32_0 : i32, i32, i32
  }
  func.func @transform_2(%arg0: i32) -> (i32, i32, i32) {
    %c0_i32 = arith.constant 0 : i32
    %c0_i32_0 = arith.constant 0 : i32
    %c0_i32_1 = arith.constant 0 : i32
    return %arg0, %c0_i32, %c0_i32_0 : i32, i32, i32
  }
  func.func @transform_3(%arg0: i32) -> (i32, i32, i32) {
    %c0_i32 = arith.constant 0 : i32
    %c0_i32_0 = arith.constant 0 : i32
    %c0_i32_1 = arith.constant 0 : i32
    return %arg0, %c0_i32, %c0_i32_0 : i32, i32, i32
  }
  func.func @transform_4(%arg0: i32) -> (i32, i32) {
    %c0_i32 = arith.constant 0 : i32
    %c0_i32_0 = arith.constant 0 : i32
    %c0_i32_1 = arith.constant 0 : i32
    return %c0_i32, %c0_i32_0 : i32, i32
  }
  func.func @transform_5(%arg0: i32) -> (i32, i32) {
    %c0_i32 = arith.constant 0 : i32
    %c0_i32_0 = arith.constant 0 : i32
    %c0_i32_1 = arith.constant 0 : i32
    return %c0_i32, %c0_i32_0 : i32, i32
  }
  func.func @transform_6(%arg0: i32) -> (i32, i32) {
    %c0_i32 = arith.constant 0 : i32
    %c0_i32_0 = arith.constant 0 : i32
    %c0_i32_1 = arith.constant 0 : i32
    return %c0_i32, %c0_i32_0 : i32, i32
  }
  func.func @transform_7(%arg0: i32) -> (i32, i32) {
    %c0_i32 = arith.constant 0 : i32
    %c0_i32_0 = arith.constant 0 : i32
    %c0_i32_1 = arith.constant 0 : i32
    return %c0_i32, %c0_i32_0 : i32, i32
  }
  func.func @transform_8(%arg0: i32) -> (i32, i32) {
    %c0_i32 = arith.constant 0 : i32
    %c0_i32_0 = arith.constant 0 : i32
    %c0_i32_1 = arith.constant 0 : i32
    return %c0_i32, %c0_i32_0 : i32, i32
  }
  func.func @transform_9(%arg0: i32) -> (i32, i32) {
    %c0_i32 = arith.constant 0 : i32
    %c0_i32_0 = arith.constant 0 : i32
    %c0_i32_1 = arith.constant 0 : i32
    return %c0_i32, %c0_i32_0 : i32, i32
  }
  func.func @transform_10(%arg0: i32) -> (i32, i32) {
    %c0_i32 = arith.constant 0 : i32
    %c0_i32_0 = arith.constant 0 : i32
    %c0_i32_1 = arith.constant 0 : i32
    return %c0_i32, %c0_i32_0 : i32, i32
  }
  func.func @transform_11(%arg0: i32) -> (i32, i32) {
    %c0_i32 = arith.constant 0 : i32
    %c0_i32_0 = arith.constant 0 : i32
    %c0_i32_1 = arith.constant 0 : i32
    return %c0_i32, %c0_i32_0 : i32, i32
  }
  func.func @transform_12(%arg0: i32) -> (i32, i32) {
    %c0_i32 = arith.constant 0 : i32
    %c0_i32_0 = arith.constant 0 : i32
    %c0_i32_1 = arith.constant 0 : i32
    return %c0_i32, %c0_i32_0 : i32, i32
  }
  func.func @transform_13(%arg0: i32) -> (i32, i32) {
    %c0_i32 = arith.constant 0 : i32
    %c0_i32_0 = arith.constant 0 : i32
    %c0_i32_1 = arith.constant 0 : i32
    return %c0_i32, %c0_i32_0 : i32, i32
  }
  func.func @transform_14(%arg0: i32) -> (i32, i32) {
    %c0_i32 = arith.constant 0 : i32
    %c0_i32_0 = arith.constant 0 : i32
    %c0_i32_1 = arith.constant 0 : i32
    return %c0_i32, %c0_i32_0 : i32, i32
  }
  func.func @transform_15(%arg0: i32) -> (i32, i32) {
    %c0_i32 = arith.constant 0 : i32
    %c0_i32_0 = arith.constant 0 : i32
    %c0_i32_1 = arith.constant 0 : i32
    return %c0_i32, %c0_i32_0 : i32, i32
  }
  func.func @transform_16(%arg0: i32) -> (i32, i32, i32) {
    %c0_i32 = arith.constant 0 : i32
    %c0_i32_0 = arith.constant 0 : i32
    %c0_i32_1 = arith.constant 0 : i32
    return %arg0, %c0_i32, %c0_i32_0 : i32, i32, i32
  }
  func.func @transform_17(%arg0: i32) -> (i32, i32, i32) {
    %c0_i32 = arith.constant 0 : i32
    %c0_i32_0 = arith.constant 0 : i32
    %c0_i32_1 = arith.constant 0 : i32
    return %arg0, %c0_i32, %c0_i32_0 : i32, i32, i32
  }
}

</mosaic_0001>

<llo_original>
// kernel: tpu_custom_call.1
$region0: #{tpu_custom_call.1}
  #allocation0 [shape = 'u32[]', space=smem, size = 0x4, offset = 0x4, fixed_abs, tag = 'smem constant byte address 0x4 - core index']
  #allocation1 [shape = 'u32[144,128]{1,0:T(1,128)}', space=vmem, size = 0x12000, scoped, tag = 'internal scratch']
  %s0 = inlined_call_operand.vmem [shape: f32[4,8,32], index: 0, kind: input, shape index: {}]
  %s1 = inlined_call_operand.vmem [shape: f32[4,8,32], index: 1, kind: input, shape index: {}]
  %s2 = inlined_call_operand.vmem [shape: f32[4,8,32], index: 2, kind: input, shape index: {}]
  %s3 = inlined_call_operand.vmem [shape: s32[4,1,8], index: 3, kind: input, shape index: {}]
  %s4 = inlined_call_operand.vmem [shape: f32[1,32], index: 4, kind: input, shape index: {}]
  %s5 = inlined_call_operand.vmem [shape: f32[1,32], index: 5, kind: input, shape index: {}]
  %s6 = inlined_call_operand.vmem [shape: bf16[32,32], index: 6, kind: input, shape index: {}]
  %s7 = inlined_call_operand.vmem [shape: bf16[32,32], index: 7, kind: input, shape index: {}]
  %s8 = inlined_call_operand.vmem [shape: bf16[32,32], index: 8, kind: input, shape index: {}]
  %s9 = inlined_call_operand.vmem [shape: bf16[32,32], index: 9, kind: input, shape index: {}]
  %s10 = inlined_call_operand.vmem [shape: f32[1,32], index: 10, kind: input, shape index: {}]
  %s11 = inlined_call_operand.vmem [shape: f32[1,32], index: 11, kind: input, shape index: {}]
  %s12 = inlined_call_operand.vmem [shape: bf16[96,64], index: 12, kind: input, shape index: {}]
  %s13 = inlined_call_operand.vmem [shape: f32[1,64], index: 13, kind: input, shape index: {}]
  %s14 = inlined_call_operand.vmem [shape: bf16[192,32], index: 14, kind: input, shape index: {}]
  %s15 = inlined_call_operand.vmem [shape: f32[1,32], index: 15, kind: input, shape index: {}]
  %s16 = inlined_call_operand.hbm [shape: f32[4,8,32], index: 16, kind: output, shape index: {0}]
  %s17 = inlined_call_operand.hbm [shape: f32[4,8,16], index: 17, kind: output, shape index: {1}]
  %18 = xla_tuple %s16, %s17
  %s19 = sld [smem:[#allocation0]]
  $region105: #{tpu_custom_call.1} parent=0
    _
  %s21 = ssub.s32 1, %s19
  %s22 = scalar_select 0, %s21, %s19
  $region1: #{tpu_custom_call.1} parent=0
    #allocation2 [shape = 'u8[16384]{0}', space=vmem, size = 0x4000, scoped, tag = 'output window, operand 0']
    #allocation3 [shape = 's32[2]{0}', space=sflag, size = 0x8, scoped, tag = 'scoped memory for tpu_custom_call.1']
    #allocation4 [shape = 'u8[16384]{0}', space=vmem, size = 0x4000, scoped, tag = 'output window, operand 1']
    #allocation5 [shape = 's32[2]{0}', space=sflag, size = 0x8, scoped, tag = 'scoped memory for tpu_custom_call.1']
    %23 = vsyncpa [#allocation3], 0
    %s24 = scalar_lea.sflag [#allocation3], 1
    %25 = vsyncpa %s24, 0
    %26 = vsyncpa [#allocation5], 0
    %s27 = scalar_lea.sflag [#allocation5], 1
    %28 = vsyncpa %s27, 0
    loop: start=0, step=1, limit=4
    $region2: #{tpu_custom_call.1} parent=1 // loop_pre_header
      _
    $region3: #{tpu_custom_call.1} parent=1 // loop_header
      %s30 = sphi 0, %s34
      %p31 = scmp.ge.s32.totalorder %s30, 4
      %s40 = sphi 0, %s42
      %s43 = sphi 0, %s40
      %s44 = sphi 0, %s43
      %s60 = sphi 0, %s44
      %s66 = sphi 0, %s68
      %s69 = sphi 0, %s66
      %s70 = sphi 0, %s69
      %s86 = sphi 0, %s70
      %s92 = sphi 0, %s94
      %s95 = sphi 0, %s92
      %s96 = sphi 0, %s95
      %s112 = sphi 0, %s96
      %s118 = sphi 0, %s120
      %s121 = sphi 0, %s118
      %s122 = sphi 0, %s121
      %s138 = sphi 0, %s122
      %s142 = sphi 0, %s142
      %s144 = sphi 0, %s142
      %s145 = sphi 0, %s144
      %s159 = sphi 0, %s145
      %s163 = sphi 0, %s163
      %s165 = sphi 0, %s163
      %s166 = sphi 0, %s165
      %s180 = sphi 0, %s166
      %s184 = sphi 0, %s184
      %s186 = sphi 0, %s184
      %s187 = sphi 0, %s186
      %s201 = sphi 0, %s187
      %s205 = sphi 0, %s205
      %s207 = sphi 0, %s205
      %s208 = sphi 0, %s207
      %s222 = sphi 0, %s208
      %s226 = sphi 0, %s226
      %s228 = sphi 0, %s226
      %s229 = sphi 0, %s228
      %s243 = sphi 0, %s229
      %s247 = sphi 0, %s247
      %s249 = sphi 0, %s247
      %s250 = sphi 0, %s249
      %s264 = sphi 0, %s250
      %s268 = sphi 0, %s268
      %s270 = sphi 0, %s268
      %s271 = sphi 0, %s270
      %s285 = sphi 0, %s271
      %s289 = sphi 0, %s289
      %s291 = sphi 0, %s289
      %s292 = sphi 0, %s291
      %s306 = sphi 0, %s292
      %s310 = sphi 0, %s310
      %s312 = sphi 0, %s310
      %s313 = sphi 0, %s312
      %s327 = sphi 0, %s313
      %s331 = sphi 0, %s331
      %s333 = sphi 0, %s331
      %s334 = sphi 0, %s333
      %s348 = sphi 0, %s334
      %s352 = sphi 0, %s352
      %s354 = sphi 0, %s352
      %s355 = sphi 0, %s354
      %s369 = sphi 0, %s355
      %s373 = sphi 0, %s373
      %s375 = sphi 0, %s373
      %s376 = sphi 0, %s375
      %s390 = sphi 0, %s376
      %s396 = sphi 0, %s398
      %s399 = sphi 0, %s396
      %s400 = sphi 0, %s399
      %s416 = sphi 0, %s400
      %s422 = sphi 0, %s424
      %s425 = sphi 0, %s422
      %s426 = sphi 0, %s425
      %s442 = sphi 0, %s426
    $region4: #{tpu_custom_call.1} parent=1 // loop_header_branch
      %33 = sbr.rel (%p31) target = $region8
    $region5: #{tpu_custom_call.1} parent=1 // loop_body
      %s35 = ssub.s32 %s30, 1
      %s36 = ssub.s32 %s30, 2
      %s37 = sadd.s32 %s30, 1
      %s38 = ssub.s32 %s30, %s37
      %p39 = scmp.eq.s32.totalorder %s38, 0
      %s41 = sadd.s32 %s40, 1
      %s42 = scalar_select %p39, %s40, %s41
      %p45 = pneg %p39
      %p46 = scmp.eq.s32.totalorder %s30, 1
      %p47 = por %p45, %p46
      %p48 = scmp.ne.s32.totalorder %s40, %s43
      %p49 = scmp.eq.s32.totalorder %s30, 0
      %p50 = por %p48, %p49
      %p51 = scmp.ne.s32.totalorder %s40, %s43
      %p52 = scmp.eq.s32.totalorder %s35, 1
      %p53 = por %p51, %p52
      %p54 = scmp.ne.s32.totalorder %s43, %s44
      %p55 = scmp.eq.s32.totalorder %s35, 0
      %p56 = por %p54, %p55
      %p57 = scmp.ne.s32.totalorder %s43, %s44
      %p58 = scmp.eq.s32.totalorder %s36, 1
      %p59 = por %p57, %p58
      %p61 = scmp.ne.s32.totalorder %s44, %s60
      %p62 = scmp.eq.s32.totalorder %s36, 0
      %p63 = por %p61, %p62
      %s64 = ssub.s32 %s30, %s37
      %p65 = scmp.eq.s32.totalorder %s64, 0
      %s67 = sadd.s32 %s66, 1
      %s68 = scalar_select %p65, %s66, %s67
      %p71 = pneg %p65
      %p72 = scmp.eq.s32.totalorder %s30, 1
      %p73 = por %p71, %p72
      %p74 = scmp.ne.s32.totalorder %s66, %s69
      %p75 = scmp.eq.s32.totalorder %s30, 0
      %p76 = por %p74, %p75
      %p77 = scmp.ne.s32.totalorder %s66, %s69
      %p78 = scmp.eq.s32.totalorder %s35, 1
      %p79 = por %p77, %p78
      %p80 = scmp.ne.s32.totalorder %s69, %s70
      %p81 = scmp.eq.s32.totalorder %s35, 0
      %p82 = por %p80, %p81
      %p83 = scmp.ne.s32.totalorder %s69, %s70
      %p84 = scmp.eq.s32.totalorder %s36, 1
      %p85 = por %p83, %p84
      %p87 = scmp.ne.s32.totalorder %s70, %s86
      %p88 = scmp.eq.s32.totalorder %s36, 0
      %p89 = por %p87, %p88
      %s90 = ssub.s32 %s30, %s37
      %p91 = scmp.eq.s32.totalorder %s90, 0
      %s93 = sadd.s32 %s92, 1
      %s94 = scalar_select %p91, %s92, %s93
      %p97 = pneg %p91
      %p98 = scmp.eq.s32.totalorder %s30, 1
      %p99 = por %p97, %p98
      %p100 = scmp.ne.s32.totalorder %s92, %s95
      %p101 = scmp.eq.s32.totalorder %s30, 0
      %p102 = por %p100, %p101
      %p103 = scmp.ne.s32.totalorder %s92, %s95
      %p104 = scmp.eq.s32.totalorder %s35, 1
      %p105 = por %p103, %p104
      %p106 = scmp.ne.s32.totalorder %s95, %s96
      %p107 = scmp.eq.s32.totalorder %s35, 0
      %p108 = por %p106, %p107
      %p109 = scmp.ne.s32.totalorder %s95, %s96
      %p110 = scmp.eq.s32.totalorder %s36, 1
      %p111 = por %p109, %p110
      %p113 = scmp.ne.s32.totalorder %s96, %s112
      %p114 = scmp.eq.s32.totalorder %s36, 0
      %p115 = por %p113, %p114
      %s116 = ssub.s32 %s30, %s37
      %p117 = scmp.eq.s32.totalorder %s116, 0
      %s119 = sadd.s32 %s118, 1
      %s120 = scalar_select %p117, %s118, %s119
      %p123 = pneg %p117
      %p124 = scmp.eq.s32.totalorder %s30, 1
      %p125 = por %p123, %p124
      %p126 = scmp.ne.s32.totalorder %s118, %s121
      %p127 = scmp.eq.s32.totalorder %s30, 0
      %p128 = por %p126, %p127
      %p129 = scmp.ne.s32.totalorder %s118, %s121
      %p130 = scmp.eq.s32.totalorder %s35, 1
      %p131 = por %p129, %p130
      %p132 = scmp.ne.s32.totalorder %s121, %s122
      %p133 = scmp.eq.s32.totalorder %s35, 0
      %p134 = por %p132, %p133
      %p135 = scmp.ne.s32.totalorder %s121, %s122
      %p136 = scmp.eq.s32.totalorder %s36, 1
      %p137 = por %p135, %p136
      %p139 = scmp.ne.s32.totalorder %s122, %s138
      %p140 = scmp.eq.s32.totalorder %s36, 0
      %p141 = por %p139, %p140
      %s143 = sadd.s32 %s142, 1
      %p146 = scmp.eq.s32.totalorder %s30, 1
      %p147 = scmp.ne.s32.totalorder %s142, %s144
      %p148 = scmp.eq.s32.totalorder %s30, 0
      %p149 = por %p147, %p148
      %p150 = scmp.ne.s32.totalorder %s142, %s144
      %p151 = scmp.eq.s32.totalorder %s35, 1
      %p152 = por %p150, %p151
      %p153 = scmp.ne.s32.totalorder %s144, %s145
      %p154 = scmp.eq.s32.totalorder %s35, 0
      %p155 = por %p153, %p154
      %p156 = scmp.ne.s32.totalorder %s144, %s145
      %p157 = scmp.eq.s32.totalorder %s36, 1
      %p158 = por %p156, %p157
      %p160 = scmp.ne.s32.totalorder %s145, %s159
      %p161 = scmp.eq.s32.totalorder %s36, 0
      %p162 = por %p160, %p161
      %s164 = sadd.s32 %s163, 1
      %p167 = scmp.eq.s32.totalorder %s30, 1
      %p168 = scmp.ne.s32.totalorder %s163, %s165
      %p169 = scmp.eq.s32.totalorder %s30, 0
      %p170 = por %p168, %p169
      %p171 = scmp.ne.s32.totalorder %s163, %s165
      %p172 = scmp.eq.s32.totalorder %s35, 1
      %p173 = por %p171, %p172
      %p174 = scmp.ne.s32.totalorder %s165, %s166
      %p175 = scmp.eq.s32.totalorder %s35, 0
      %p176 = por %p174, %p175
      %p177 = scmp.ne.s32.totalorder %s165, %s166
      %p178 = scmp.eq.s32.totalorder %s36, 1
      %p179 = por %p177, %p178
      %p181 = scmp.ne.s32.totalorder %s166, %s180
      %p182 = scmp.eq.s32.totalorder %s36, 0
      %p183 = por %p181, %p182
      %s185 = sadd.s32 %s184, 1
      %p188 = scmp.eq.s32.totalorder %s30, 1
      %p189 = scmp.ne.s32.totalorder %s184, %s186
      %p190 = scmp.eq.s32.totalorder %s30, 0
      %p191 = por %p189, %p190
      %p192 = scmp.ne.s32.totalorder %s184, %s186
      %p193 = scmp.eq.s32.totalorder %s35, 1
      %p194 = por %p192, %p193
      %p195 = scmp.ne.s32.totalorder %s186, %s187
      %p196 = scmp.eq.s32.totalorder %s35, 0
      %p197 = por %p195, %p196
      %p198 = scmp.ne.s32.totalorder %s186, %s187
      %p199 = scmp.eq.s32.totalorder %s36, 1
      %p200 = por %p198, %p199
      %p202 = scmp.ne.s32.totalorder %s187, %s201
      %p203 = scmp.eq.s32.totalorder %s36, 0
      %p204 = por %p202, %p203
      %s206 = sadd.s32 %s205, 1
      %p209 = scmp.eq.s32.totalorder %s30, 1
      %p210 = scmp.ne.s32.totalorder %s205, %s207
      %p211 = scmp.eq.s32.totalorder %s30, 0
      %p212 = por %p210, %p211
      %p213 = scmp.ne.s32.totalorder %s205, %s207
      %p214 = scmp.eq.s32.totalorder %s35, 1
      %p215 = por %p213, %p214
      %p216 = scmp.ne.s32.totalorder %s207, %s208
      %p217 = scmp.eq.s32.totalorder %s35, 0
      %p218 = por %p216, %p217
      %p219 = scmp.ne.s32.totalorder %s207, %s208
      %p220 = scmp.eq.s32.totalorder %s36, 1
      %p221 = por %p219, %p220
      %p223 = scmp.ne.s32.totalorder %s208, %s222
      %p224 = scmp.eq.s32.totalorder %s36, 0
      %p225 = por %p223, %p224
      %s227 = sadd.s32 %s226, 1
      %p230 = scmp.eq.s32.totalorder %s30, 1
      %p231 = scmp.ne.s32.totalorder %s226, %s228
      %p232 = scmp.eq.s32.totalorder %s30, 0
      %p233 = por %p231, %p232
      %p234 = scmp.ne.s32.totalorder %s226, %s228
      %p235 = scmp.eq.s32.totalorder %s35, 1
      %p236 = por %p234, %p235
      %p237 = scmp.ne.s32.totalorder %s228, %s229
      %p238 = scmp.eq.s32.totalorder %s35, 0
      %p239 = por %p237, %p238
      %p240 = scmp.ne.s32.totalorder %s228, %s229
      %p241 = scmp.eq.s32.totalorder %s36, 1
      %p242 = por %p240, %p241
      %p244 = scmp.ne.s32.totalorder %s229, %s243
      %p245 = scmp.eq.s32.totalorder %s36, 0
      %p246 = por %p244, %p245
      %s248 = sadd.s32 %s247, 1
      %p251 = scmp.eq.s32.totalorder %s30, 1
      %p252 = scmp.ne.s32.totalorder %s247, %s249
      %p253 = scmp.eq.s32.totalorder %s30, 0
      %p254 = por %p252, %p253
      %p255 = scmp.ne.s32.totalorder %s247, %s249
      %p256 = scmp.eq.s32.totalorder %s35, 1
      %p257 = por %p255, %p256
      %p258 = scmp.ne.s32.totalorder %s249, %s250
      %p259 = scmp.eq.s32.totalorder %s35, 0
      %p260 = por %p258, %p259
      %p261 = scmp.ne.s32.totalorder %s249, %s250
      %p262 = scmp.eq.s32.totalorder %s36, 1
      %p263 = por %p261, %p262
      %p265 = scmp.ne.s32.totalorder %s250, %s264
      %p266 = scmp.eq.s32.totalorder %s36, 0
      %p267 = por %p265, %p266
      %s269 = sadd.s32 %s268, 1
      %p272 = scmp.eq.s32.totalorder %s30, 1
      %p273 = scmp.ne.s32.totalorder %s268, %s270
      %p274 = scmp.eq.s32.totalorder %s30, 0
      %p275 = por %p273, %p274
      %p276 = scmp.ne.s32.totalorder %s268, %s270
      %p277 = scmp.eq.s32.totalorder %s35, 1
      %p278 = por %p276, %p277
      %p279 = scmp.ne.s32.totalorder %s270, %s271
      %p280 = scmp.eq.s32.totalorder %s35, 0
      %p281 = por %p279, %p280
      %p282 = scmp.ne.s32.totalorder %s270, %s271
      %p283 = scmp.eq.s32.totalorder %s36, 1
      %p284 = por %p282, %p283
      %p286 = scmp.ne.s32.totalorder %s271, %s285
      %p287 = scmp.eq.s32.totalorder %s36, 0
      %p288 = por %p286, %p287
      %s290 = sadd.s32 %s289, 1
      %p293 = scmp.eq.s32.totalorder %s30, 1
      %p294 = scmp.ne.s32.totalorder %s289, %s291
      %p295 = scmp.eq.s32.totalorder %s30, 0
      %p296 = por %p294, %p295
      %p297 = scmp.ne.s32.totalorder %s289, %s291
      %p298 = scmp.eq.s32.totalorder %s35, 1
      %p299 = por %p297, %p298
      %p300 = scmp.ne.s32.totalorder %s291, %s292
      %p301 = scmp.eq.s32.totalorder %s35, 0
      %p302 = por %p300, %p301
      %p303 = scmp.ne.s32.totalorder %s291, %s292
      %p304 = scmp.eq.s32.totalorder %s36, 1
      %p305 = por %p303, %p304
      %p307 = scmp.ne.s32.totalorder %s292, %s306
      %p308 = scmp.eq.s32.totalorder %s36, 0
      %p309 = por %p307, %p308
      %s311 = sadd.s32 %s310, 1
      %p314 = scmp.eq.s32.totalorder %s30, 1
      %p315 = scmp.ne.s32.totalorder %s310, %s312
      %p316 = scmp.eq.s32.totalorder %s30, 0
      %p317 = por %p315, %p316
      %p318 = scmp.ne.s32.totalorder %s310, %s312
      %p319 = scmp.eq.s32.totalorder %s35, 1
      %p320 = por %p318, %p319
      %p321 = scmp.ne.s32.totalorder %s312, %s313
      %p322 = scmp.eq.s32.totalorder %s35, 0
      %p323 = por %p321, %p322
      %p324 = scmp.ne.s32.totalorder %s312, %s313
      %p325 = scmp.eq.s32.totalorder %s36, 1
      %p326 = por %p324, %p325
      %p328 = scmp.ne.s32.totalorder %s313, %s327
      %p329 = scmp.eq.s32.totalorder %s36, 0
      %p330 = por %p328, %p329
      %s332 = sadd.s32 %s331, 1
      %p335 = scmp.eq.s32.totalorder %s30, 1
      %p336 = scmp.ne.s32.totalorder %s331, %s333
      %p337 = scmp.eq.s32.totalorder %s30, 0
      %p338 = por %p336, %p337
      %p339 = scmp.ne.s32.totalorder %s331, %s333
      %p340 = scmp.eq.s32.totalorder %s35, 1
      %p341 = por %p339, %p340
      %p342 = scmp.ne.s32.totalorder %s333, %s334
      %p343 = scmp.eq.s32.totalorder %s35, 0
      %p344 = por %p342, %p343
      %p345 = scmp.ne.s32.totalorder %s333, %s334
      %p346 = scmp.eq.s32.totalorder %s36, 1
      %p347 = por %p345, %p346
      %p349 = scmp.ne.s32.totalorder %s334, %s348
      %p350 = scmp.eq.s32.totalorder %s36, 0
      %p351 = por %p349, %p350
      %s353 = sadd.s32 %s352, 1
      %p356 = scmp.eq.s32.totalorder %s30, 1
      %p357 = scmp.ne.s32.totalorder %s352, %s354
      %p358 = scmp.eq.s32.totalorder %s30, 0
      %p359 = por %p357, %p358
      %p360 = scmp.ne.s32.totalorder %s352, %s354
      %p361 = scmp.eq.s32.totalorder %s35, 1
      %p362 = por %p360, %p361
      %p363 = scmp.ne.s32.totalorder %s354, %s355
      %p364 = scmp.eq.s32.totalorder %s35, 0
      %p365 = por %p363, %p364
      %p366 = scmp.ne.s32.totalorder %s354, %s355
      %p367 = scmp.eq.s32.totalorder %s36, 1
      %p368 = por %p366, %p367
      %p370 = scmp.ne.s32.totalorder %s355, %s369
      %p371 = scmp.eq.s32.totalorder %s36, 0
      %p372 = por %p370, %p371
      %s374 = sadd.s32 %s373, 1
      %p377 = scmp.eq.s32.totalorder %s30, 1
      %p378 = scmp.ne.s32.totalorder %s373, %s375
      %p379 = scmp.eq.s32.totalorder %s30, 0
      %p380 = por %p378, %p379
      %p381 = scmp.ne.s32.totalorder %s373, %s375
      %p382 = scmp.eq.s32.totalorder %s35, 1
      %p383 = por %p381, %p382
      %p384 = scmp.ne.s32.totalorder %s375, %s376
      %p385 = scmp.eq.s32.totalorder %s35, 0
      %p386 = por %p384, %p385
      %p387 = scmp.ne.s32.totalorder %s375, %s376
      %p388 = scmp.eq.s32.totalorder %s36, 1
      %p389 = por %p387, %p388
      %p391 = scmp.ne.s32.totalorder %s376, %s390
      %p392 = scmp.eq.s32.totalorder %s36, 0
      %p393 = por %p391, %p392
      %s394 = ssub.s32 %s30, %s37
      %p395 = scmp.eq.s32.totalorder %s394, 0
      %s397 = sadd.s32 %s396, 1
      %s398 = scalar_select %p395, %s396, %s397
      %p401 = pneg %p395
      %p402 = scmp.eq.s32.totalorder %s30, 1
      %p403 = por %p401, %p402
      %p404 = scmp.ne.s32.totalorder %s396, %s399
      %p405 = scmp.eq.s32.totalorder %s30, 0
      %p406 = por %p404, %p405
      %p407 = scmp.ne.s32.totalorder %s396, %s399
      %p408 = scmp.eq.s32.totalorder %s35, 1
      %p409 = por %p407, %p408
      %p410 = scmp.ne.s32.totalorder %s399, %s400
      %p411 = scmp.eq.s32.totalorder %s35, 0
      %p412 = por %p410, %p411
      %p413 = scmp.ne.s32.totalorder %s399, %s400
      %p414 = scmp.eq.s32.totalorder %s36, 1
      %p415 = por %p413, %p414
      %p417 = scmp.ne.s32.totalorder %s400, %s416
      %p418 = scmp.eq.s32.totalorder %s36, 0
      %p419 = por %p417, %p418
      %s420 = ssub.s32 %s30, %s37
      %p421 = scmp.eq.s32.totalorder %s420, 0
      %s423 = sadd.s32 %s422, 1
      %s424 = scalar_select %p421, %s422, %s423
      %p427 = pneg %p421
      %p428 = scmp.eq.s32.totalorder %s30, 1
      %p429 = por %p427, %p428
      %p430 = scmp.ne.s32.totalorder %s422, %s425
      %p431 = scmp.eq.s32.totalorder %s30, 0
      %p432 = por %p430, %p431
      %p433 = scmp.ne.s32.totalorder %s422, %s425
      %p434 = scmp.eq.s32.totalorder %s35, 1
      %p435 = por %p433, %p434
      %p436 = scmp.ne.s32.totalorder %s425, %s426
      %p437 = scmp.eq.s32.totalorder %s35, 0
      %p438 = por %p436, %p437
      %p439 = scmp.ne.s32.totalorder %s425, %s426
      %p440 = scmp.eq.s32.totalorder %s36, 1
      %p441 = por %p439, %p440
      %p443 = scmp.ne.s32.totalorder %s426, %s442
      %p444 = scmp.eq.s32.totalorder %s36, 0
      %p445 = por %p443, %p444
      %p446 = scmp.le.s32.totalorder 1, %s30
      %p447 = scmp.lt.s32.totalorder %s30, 3
      %p448 = pnand %p446, %p447
      %p449 = pneg %p448
      // Predicated region
      $region9: #{tpu_custom_call.1} parent=5 // pred_check
        _
      $region10: #{tpu_custom_call.1} parent=5 // pred_check_branch
        %451 = sbr.rel (%p448) target = $region12
      $region11: #{tpu_custom_call.1} parent=5 // pred_region
        %s452 = ssub.s32 %s30, 1
        // Predicated region
        $region13: #{tpu_custom_call.1} parent=11 // pred_check
          %p453 = pneg %p155
        $region14: #{tpu_custom_call.1} parent=11 // pred_check_branch
          %455 = sbr.rel (%p453) target = $region16
        $region15: #{tpu_custom_call.1} parent=11 // pred_region
          _
        $region16: #{tpu_custom_call.1} parent=11 // pred_fallthru
          _
        // Predicated region
        $region17: #{tpu_custom_call.1} parent=11 // pred_check
          %p456 = pneg %p176
        $region18: #{tpu_custom_call.1} parent=11 // pred_check_branch
          %458 = sbr.rel (%p456) target = $region20
        $region19: #{tpu_custom_call.1} parent=11 // pred_region
          _
        $region20: #{tpu_custom_call.1} parent=11 // pred_fallthru
          _
        // Predicated region
        $region21: #{tpu_custom_call.1} parent=11 // pred_check
          %p459 = pneg %p197
        $region22: #{tpu_custom_call.1} parent=11 // pred_check_branch
          %461 = sbr.rel (%p459) target = $region24
        $region23: #{tpu_custom_call.1} parent=11 // pred_region
          _
        $region24: #{tpu_custom_call.1} parent=11 // pred_fallthru
          _
        // Predicated region
        $region25: #{tpu_custom_call.1} parent=11 // pred_check
          %p462 = pneg %p218
        $region26: #{tpu_custom_call.1} parent=11 // pred_check_branch
          %464 = sbr.rel (%p462) target = $region28
        $region27: #{tpu_custom_call.1} parent=11 // pred_region
          _
        $region28: #{tpu_custom_call.1} parent=11 // pred_fallthru
          _
        // Predicated region
        $region29: #{tpu_custom_call.1} parent=11 // pred_check
          %p465 = pneg %p239
        $region30: #{tpu_custom_call.1} parent=11 // pred_check_branch
          %467 = sbr.rel (%p465) target = $region32
        $region31: #{tpu_custom_call.1} parent=11 // pred_region
          _
        $region32: #{tpu_custom_call.1} parent=11 // pred_fallthru
          _
        // Predicated region
        $region33: #{tpu_custom_call.1} parent=11 // pred_check
          %p468 = pneg %p260
        $region34: #{tpu_custom_call.1} parent=11 // pred_check_branch
          %470 = sbr.rel (%p468) target = $region36
        $region35: #{tpu_custom_call.1} parent=11 // pred_region
          _
        $region36: #{tpu_custom_call.1} parent=11 // pred_fallthru
          _
        // Predicated region
        $region37: #{tpu_custom_call.1} parent=11 // pred_check
          %p471 = pneg %p281
        $region38: #{tpu_custom_call.1} parent=11 // pred_check_branch
          %473 = sbr.rel (%p471) target = $region40
        $region39: #{tpu_custom_call.1} parent=11 // pred_region
          _
        $region40: #{tpu_custom_call.1} parent=11 // pred_fallthru
          _
        // Predicated region
        $region41: #{tpu_custom_call.1} parent=11 // pred_check
          %p474 = pneg %p302
        $region42: #{tpu_custom_call.1} parent=11 // pred_check_branch
          %476 = sbr.rel (%p474) target = $region44
        $region43: #{tpu_custom_call.1} parent=11 // pred_region
          _
        $region44: #{tpu_custom_call.1} parent=11 // pred_fallthru
          _
        // Predicated region
        $region45: #{tpu_custom_call.1} parent=11 // pred_check
          %p477 = pneg %p323
        $region46: #{tpu_custom_call.1} parent=11 // pred_check_branch
          %479 = sbr.rel (%p477) target = $region48
        $region47: #{tpu_custom_call.1} parent=11 // pred_region
          _
        $region48: #{tpu_custom_call.1} parent=11 // pred_fallthru
          _
        // Predicated region
        $region49: #{tpu_custom_call.1} parent=11 // pred_check
          %p480 = pneg %p344
        $region50: #{tpu_custom_call.1} parent=11 // pred_check_branch
          %482 = sbr.rel (%p480) target = $region52
        $region51: #{tpu_custom_call.1} parent=11 // pred_region
          _
        $region52: #{tpu_custom_call.1} parent=11 // pred_fallthru
          _
        // Predicated region
        $region53: #{tpu_custom_call.1} parent=11 // pred_check
          %p483 = pneg %p365
        $region54: #{tpu_custom_call.1} parent=11 // pred_check_branch
          %485 = sbr.rel (%p483) target = $region56
        $region55: #{tpu_custom_call.1} parent=11 // pred_region
          _
        $region56: #{tpu_custom_call.1} parent=11 // pred_fallthru
          _
        // Predicated region
        $region57: #{tpu_custom_call.1} parent=11 // pred_check
          %p486 = pneg %p386
        $region58: #{tpu_custom_call.1} parent=11 // pred_check_branch
          %488 = sbr.rel (%p486) target = $region60
        $region59: #{tpu_custom_call.1} parent=11 // pred_region
          _
        $region60: #{tpu_custom_call.1} parent=11 // pred_fallthru
          _
      $region12: #{tpu_custom_call.1} parent=5 // pred_fallthru
        _
      %p489 = scmp.lt.s32.totalorder %s30, 2
      // Predicated region
      $region61: #{tpu_custom_call.1} parent=5 // pred_check
        %p490 = pneg %p489
      $region62: #{tpu_custom_call.1} parent=5 // pred_check_branch
        %492 = sbr.rel (%p490) target = $region64
      $region63: #{tpu_custom_call.1} parent=5 // pred_region
        // Predicated region
        $region65: #{tpu_custom_call.1} parent=63 // pred_check
          %p493 = pneg %p50
        $region66: #{tpu_custom_call.1} parent=63 // pred_check_branch
          %495 = sbr.rel (%p493) target = $region68
        $region67: #{tpu_custom_call.1} parent=63 // pred_region
          %s496 = smul.u32 2, %s30
          %p497 = scmp.lt.s32.totalorder %s496, 3
          %s498 = scalar_select %p497, %s496, 3
          %s499 = smul.addr %s498, 8
          %s500 = scalar_lea.vmem %s0, %s499
          %s501 = smul.u32 2, %s30
        $region68: #{tpu_custom_call.1} parent=63 // pred_fallthru
          _
        // Predicated region
        $region69: #{tpu_custom_call.1} parent=63 // pred_check
          %p502 = pneg %p76
        $region70: #{tpu_custom_call.1} parent=63 // pred_check_branch
          %504 = sbr.rel (%p502) target = $region72
        $region71: #{tpu_custom_call.1} parent=63 // pred_region
          %s505 = smul.u32 2, %s30
          %p506 = scmp.lt.s32.totalorder %s505, 3
          %s507 = scalar_select %p506, %s505, 3
          %s508 = smul.addr %s507, 8
          %s509 = scalar_lea.vmem %s1, %s508
          %s510 = smul.u32 2, %s30
        $region72: #{tpu_custom_call.1} parent=63 // pred_fallthru
          _
        // Predicated region
        $region73: #{tpu_custom_call.1} parent=63 // pred_check
          %p511 = pneg %p102
        $region74: #{tpu_custom_call.1} parent=63 // pred_check_branch
          %513 = sbr.rel (%p511) target = $region76
        $region75: #{tpu_custom_call.1} parent=63 // pred_region
          %s514 = smul.u32 2, %s30
          %p515 = scmp.lt.s32.totalorder %s514, 3
          %s516 = scalar_select %p515, %s514, 3
          %s517 = smul.addr %s516, 8
          %s518 = scalar_lea.vmem %s2, %s517
          %s519 = smul.u32 2, %s30
        $region76: #{tpu_custom_call.1} parent=63 // pred_fallthru
          _
        // Predicated region
        $region77: #{tpu_custom_call.1} parent=63 // pred_check
          %p520 = pneg %p128
        $region78: #{tpu_custom_call.1} parent=63 // pred_check_branch
          %522 = sbr.rel (%p520) target = $region80
        $region79: #{tpu_custom_call.1} parent=63 // pred_region
          %s523 = smul.u32 2, %s30
          %p524 = scmp.lt.s32.totalorder %s523, 3
          %s525 = scalar_select %p524, %s523, 3
          %s526 = scalar_lea.vmem %s3, %s525
          %s527 = smul.u32 2, %s30
        $region80: #{tpu_custom_call.1} parent=63 // pred_fallthru
          _
      $region64: #{tpu_custom_call.1} parent=5 // pred_fallthru
        _
      %p528 = scmp.le.s32.totalorder 1, %s30
      %p529 = scmp.lt.s32.totalorder %s30, 3
      %p530 = pnand %p528, %p529
      %p531 = pneg %p530
      // Predicated region
      $region81: #{tpu_custom_call.1} parent=5 // pred_check
        _
      $region82: #{tpu_custom_call.1} parent=5 // pred_check_branch
        %533 = sbr.rel (%p530) target = $region84
      $region83: #{tpu_custom_call.1} parent=5 // pred_region
        %s534 = ssub.s32 %s30, 1
        %s535 = smul.u32 2, %s35
        %p536 = scmp.lt.s32.totalorder %s535, 3
        %s537 = scalar_select %p536, %s535, 3
        %s538 = smul.addr %s537, 8
        %s539 = scalar_lea.vmem %s0, %s538
        %p540 = pneg %p56
        %p541 = pneg %p53
        %s542 = smul.u32 2, %s35
        %p543 = scmp.lt.s32.totalorder %s542, 3
        %s544 = scalar_select %p543, %s542, 3
        %s545 = smul.addr %s544, 8
        %s546 = scalar_lea.vmem %s1, %s545
        %p547 = pneg %p82
        %p548 = pneg %p79
        %s549 = smul.u32 2, %s35
        %p550 = scmp.lt.s32.totalorder %s549, 3
        %s551 = scalar_select %p550, %s549, 3
        %s552 = smul.addr %s551, 8
        %s553 = scalar_lea.vmem %s2, %s552
        %p554 = pneg %p108
        %p555 = pneg %p105
        %s556 = smul.u32 2, %s35
        %p557 = scmp.lt.s32.totalorder %s556, 3
        %s558 = scalar_select %p557, %s556, 3
        %s559 = scalar_lea.vmem %s3, %s558
        %p560 = pneg %p134
        %p561 = pneg %p131
        %p562 = pneg %p155
        %p563 = pneg %p152
        %p564 = pneg %p176
        %p565 = pneg %p173
        %p566 = pneg %p197
        %p567 = pneg %p194
        %p568 = pneg %p218
        %p569 = pneg %p215
        %p570 = pneg %p239
        %p571 = pneg %p236
        %p572 = pneg %p260
        %p573 = pneg %p257
        %p574 = pneg %p281
        %p575 = pneg %p278
        %p576 = pneg %p302
        %p577 = pneg %p299
        %p578 = pneg %p323
        %p579 = pneg %p320
        %p580 = pneg %p344
        %p581 = pneg %p341
        %p582 = pneg %p365
        %p583 = pneg %p362
        %p584 = pneg %p386
        %p585 = pneg %p383
        %p586 = pneg %p412
        %p587 = pneg %p409
        %s588 = sand.u32 %s399, 1
        %s589 = scalar_lea.sflag [#allocation3], %s588
        %s590 = sand.u32 %s399, 1
        %s591 = smul.addr %s590, 16
        %s592 = scalar_lea.vmem [#allocation2], %s591
        %p593 = pneg %p438
        %p594 = pneg %p435
        %s595 = sand.u32 %s425, 1
        %s596 = scalar_lea.sflag [#allocation5], %s595
        %s597 = sand.u32 %s425, 1
        %s598 = smul.addr %s597, 16
        %s599 = scalar_lea.vmem [#allocation4], %s598
        %s600 = smul.u32 2, %s35
        %p601 = scmp.lt.s32.totalorder %s600, 3
        %s602 = scalar_select %p601, %s600, 3
        %s603 = smul.addr %s602, 8
        %s604 = scalar_lea.vmem %s0, %s603
        %s605 = smul.u32 2, %s35
        %s606 = smul.u32 2, %s35
        %p607 = scmp.lt.s32.totalorder %s606, 3
        %s608 = scalar_select %p607, %s606, 3
        %s609 = smul.addr %s608, 8
        %s610 = scalar_lea.vmem %s1, %s609
        %s611 = smul.u32 2, %s35
        %s612 = smul.u32 2, %s35
        %p613 = scmp.lt.s32.totalorder %s612, 3
        %s614 = scalar_select %p613, %s612, 3
        %s615 = smul.addr %s614, 8
        %s616 = scalar_lea.vmem %s2, %s615
        %s617 = smul.u32 2, %s35
        %s618 = smul.u32 2, %s35
        %p619 = scmp.lt.s32.totalorder %s618, 3
        %s620 = scalar_select %p619, %s618, 3
        %s621 = scalar_lea.vmem %s3, %s620
        %s622 = smul.u32 2, %s35
        %s623 = smul.u32 2, %s35
        %s624 = smul.u32 2, %s35
        %v626 = vld [vmem:[%s604] sm:$0xff]
        %v627 = vld [vmem:[%s604 + $0x8] sm:$0xff]
        %v628 = vld [vmem:[%s610] sm:$0xff]
        %v629 = vld [vmem:[%s610 + $0x8] sm:$0xff]
        %v630 = vld [vmem:[%s616] sm:$0xff]
        %v631 = vld [vmem:[%s616 + $0x8] sm:$0xff]
        %v632 = vpack.c.bf16 %v630, %v628
        %v633 = vpack.c.bf16 %v631, %v629
        %v634 = vld [vmem:[%s621] sm:$0x1]
        %v635 = vld [vmem:[%s621 + $0x1] sm:$0x1]
        %v636 = vlaneseq
        %v637 = vshrl.u32 %v636, 7
        %v638 = vsub.s32 0, %v637
        %v639 = vrot.slane %v634, %v638
        %v640 = vlaneseq
        %v641 = vshrl.u32 %v640, 7
        %v642 = vsub.s32 0, %v641
        %v643 = vrot.slane %v635, %v642
        %644 = vrot.lane.b32.xlu0 %v639, 8
        %v645 = vpop.permute.xlu0 %644
        %646 = vrot.lane.b32.xlu0 %v643, 8
        %v647 = vpop.permute.xlu0 %646
        %vm648 = vcmask 64512
        %v649 = vsel %vm648, %v634, %v645
        %v650 = vsel %vm648, %v635, %v647
        %vm651 = vcmp.gt.s32.totalorder %v649, 0
        %vm652 = vcmp.gt.s32.totalorder %v650, 0
        %v653 = vld [vmem:[%s4] sm:$0x1]
        %v654 = vld [vmem:[%s5] sm:$0x1]
        %vm655 = vcmask 261120
        %v656 = vsel %vm655, %v626, 0.0
        %657 = vadd.xlane.f32.xlu0 %v656
        %v658 = vpop.xlane.xlu0 %657
        %v659 = vsel %vm655, %v627, 0.0
        %660 = vadd.xlane.f32.xlu0 %v659
        %v661 = vpop.xlane.xlu0 %660
        %v662 = vrcp.pop 32.0
        %v663 = vmul.f32 %v658, %v662
        %v664 = vmul.f32 %v661, %v662
        %v665 = vsub.f32 %v626, %v663
        %v666 = vsub.f32 %v627, %v664
        %v667 = vmul.f32 %v665, %v665
        %v668 = vmul.f32 %v666, %v666
        %v669 = vsel %vm655, %v667, 0.0
        %670 = vadd.xlane.f32.xlu0 %v669
        %v671 = vpop.xlane.xlu0 %670
        %v672 = vsel %vm655, %v668, 0.0
        %673 = vadd.xlane.f32.xlu0 %v672
        %v674 = vpop.xlane.xlu0 %673
        %v675 = vrcp.pop 31.0
        %v676 = vmul.f32 %v671, %v675
        %v677 = vmul.f32 %v674, %v675
        %v679 = vlaneseq
        %v680 = vshrl.u32 %v679, 7
        %v681 = vsub.s32 0, %v680
        %v682 = vrot.slane %v653, %v681
        %v684 = vmul.f32 %v682, %v665
        %v685 = vmul.f32 %v682, %v666
        %v686 = vrsqrt.pop %v676
        %v687 = vmul.f32 %v676, %v686
        %vm688 = vcmp.eq.f32.partialorder %v676, inf
        %v689 = vsel %vm688, %v676, %v687
        %vm690 = vcmp.eq.f32.partialorder %v676, 0.0
        %v691 = vand.u32 %v676, 2147483648
        %v692 = vsel %vm690, %v691, %v689
        %v693 = vrsqrt.pop %v677
        %v694 = vmul.f32 %v677, %v693
        %vm695 = vcmp.eq.f32.partialorder %v677, inf
        %v696 = vsel %vm695, %v677, %v694
        %vm697 = vcmp.eq.f32.partialorder %v677, 0.0
        %v698 = vand.u32 %v677, 2147483648
        %v699 = vsel %vm697, %v698, %v696
        %v700 = vadd.f32 %v692, 1e-06
        %v701 = vadd.f32 %v699, 1e-06
        %v702 = vrcp.pop %v700
        %v703 = vmul.f32 %v684, %v702
        %v704 = vrcp.pop %v701
        %v705 = vmul.f32 %v685, %v704
        %v707 = vlaneseq
        %v708 = vshrl.u32 %v707, 7
        %v709 = vsub.s32 0, %v708
        %v710 = vrot.slane %v654, %v709
        %v712 = vadd.f32 %v703, %v710
        %v713 = vadd.f32 %v705, %v710
        %v714 = vpack.c.bf16 %v713, %v712
        %v715 = vld [vmem:[%s6] sm:$0xf]
        %v716 = vld [vmem:[%s6 + $0x4] sm:$0xf]
        %v717 = vld [vmem:[%s6 + $0x8] sm:$0xf]
        %v718 = vld [vmem:[%s6 + $0xc] sm:$0xf]
        %v723 = vunpack.c.l.b16 %v715
        %v724 = vunpack.c.l.b16 %v716
        %v725 = vunpack.c.l.b16 %v717
        %v726 = vunpack.c.l.b16 %v718
        %v727 = vpack.c.b16 %v724, %v723
        %v728 = vpack.c.b16 %v726, %v725
        %v732 = vsel %vm655, %v714, 0
        %734 = vmatprep.subr.bf16.mxu0 0
        %735 = vmatpush1.bf16.msra.mxu0 %v727
        %736 = vmatprep.subr.bf16.mxu0 0
        %737 = vmatpush1.bf16.msra.mxu0 %v728
        %738 = vmatprep.subr.bf16.mxu0 0
        %739 = vmatpush1.bf16.msra.mxu0 0
        %740 = vmatprep.subr.bf16.mxu0 0
        %741 = vmatpush1.bf16.msra.mxu0 0
        %742 = vmatprep.subr.bf16.mxu0 0
        %743 = vmatpush1.bf16.msra.mxu0 0
        %744 = vmatprep.subr.bf16.mxu0 0
        %745 = vmatpush1.bf16.msra.mxu0 0
        %746 = vmatprep.subr.bf16.mxu0 0
        %747 = vmatpush1.bf16.msra.mxu0 0
        %748 = vmatprep.subr.bf16.mxu0 0
        %749 = vmatpush1.bf16.msra.mxu0 0
        %750 = vmatprep.subr.bf16.mxu0 0
        %751 = vmatpush1.bf16.msra.mxu0 0
        %752 = vmatprep.subr.bf16.mxu0 0
        %753 = vmatpush1.bf16.msra.mxu0 0
        %754 = vmatprep.subr.bf16.mxu0 0
        %755 = vmatpush1.bf16.msra.mxu0 0
        %756 = vmatprep.subr.bf16.mxu0 0
        %757 = vmatpush1.bf16.msra.mxu0 0
        %758 = vmatprep.subr.bf16.mxu0 0
        %759 = vmatpush1.bf16.msra.mxu0 0
        %760 = vmatprep.subr.bf16.mxu0 0
        %761 = vmatpush1.bf16.msra.mxu0 0
        %762 = vmatprep.subr.bf16.mxu0 0
        %763 = vmatpush1.bf16.msra.mxu0 0
        %764 = vmatprep.subr.bf16.mxu0 0
        %765 = vmatpush1.bf16.msra.mxu0 0
        %766 = vmatprep.mubr.bf16.mxu0 0
        %767 = vmatmul.mubr.bf16.gmra.mrb[0].mxu0 %v732
        %v768 = vpop.f32.mrb[0].mxu0
        %v769 = vadd.f32 0.0, %v768
        %v770 = vpop.f32.mrb[0].mxu0
        %v771 = vpop.f32.mrb[0].mxu0
        %v772 = vadd.f32 0.0, %v771
        %v773 = vpop.f32.mrb[0].mxu0
        %774 = vdwg.mxu0
        %v775 = vld [vmem:[%s7] sm:$0xf]
        %v776 = vld [vmem:[%s7 + $0x4] sm:$0xf]
        %v777 = vld [vmem:[%s7 + $0x8] sm:$0xf]
        %v778 = vld [vmem:[%s7 + $0xc] sm:$0xf]
        %v783 = vunpack.c.l.b16 %v775
        %v784 = vunpack.c.l.b16 %v776
        %v785 = vunpack.c.l.b16 %v777
        %v786 = vunpack.c.l.b16 %v778
        %v787 = vpack.c.b16 %v784, %v783
        %v788 = vpack.c.b16 %v786, %v785
        %v792 = vsel %vm655, %v632, 0
        %v795 = vsel %vm655, %v633, 0
        %797 = vmatprep.subr.bf16.mxu0 0
        %798 = vmatpush1.bf16.msra.mxu0 %v787
        %799 = vmatprep.subr.bf16.mxu0 0
        %800 = vmatpush1.bf16.msra.mxu0 %v788
        %801 = vmatprep.subr.bf16.mxu0 0
        %802 = vmatpush1.bf16.msra.mxu0 0
        %803 = vmatprep.subr.bf16.mxu0 0
        %804 = vmatpush1.bf16.msra.mxu0 0
        %805 = vmatprep.subr.bf16.mxu0 0
        %806 = vmatpush1.bf16.msra.mxu0 0
        %807 = vmatprep.subr.bf16.mxu0 0
        %808 = vmatpush1.bf16.msra.mxu0 0
        %809 = vmatprep.subr.bf16.mxu0 0
        %810 = vmatpush1.bf16.msra.mxu0 0
        %811 = vmatprep.subr.bf16.mxu0 0
        %812 = vmatpush1.bf16.msra.mxu0 0
        %813 = vmatprep.subr.bf16.mxu0 0
        %814 = vmatpush1.bf16.msra.mxu0 0
        %815 = vmatprep.subr.bf16.mxu0 0
        %816 = vmatpush1.bf16.msra.mxu0 0
        %817 = vmatprep.subr.bf16.mxu0 0
        %818 = vmatpush1.bf16.msra.mxu0 0
        %819 = vmatprep.subr.bf16.mxu0 0
        %820 = vmatpush1.bf16.msra.mxu0 0
        %821 = vmatprep.subr.bf16.mxu0 0
        %822 = vmatpush1.bf16.msra.mxu0 0
        %823 = vmatprep.subr.bf16.mxu0 0
        %824 = vmatpush1.bf16.msra.mxu0 0
        %825 = vmatprep.subr.bf16.mxu0 0
        %826 = vmatpush1.bf16.msra.mxu0 0
        %827 = vmatprep.subr.bf16.mxu0 0
        %828 = vmatpush1.bf16.msra.mxu0 0
        %829 = vmatprep.mubr.bf16.mxu0 0
        %830 = vmatmul.mubr.bf16.gmra.mrb[0].mxu0 %v792
        %v831 = vpop.f32.mrb[0].mxu0
        %v832 = vadd.f32 0.0, %v831
        %v833 = vpop.f32.mrb[0].mxu0
        %v834 = vpop.f32.mrb[0].mxu0
        %v835 = vadd.f32 0.0, %v834
        %v836 = vpop.f32.mrb[0].mxu0
        %837 = vmatprep.mubr.bf16.mxu0 0
        %838 = vmatmul.mubr.bf16.gmra.mrb[0].mxu0 %v795
        %v839 = vpop.f32.mrb[0].mxu0
        %v840 = vadd.f32 0.0, %v839
        %v841 = vpop.f32.mrb[0].mxu0
        %v842 = vpop.f32.mrb[0].mxu0
        %v843 = vadd.f32 0.0, %v842
        %v844 = vpop.f32.mrb[0].mxu0
        %845 = vdwg.mxu0
        %v846 = vld [vmem:[%s8] sm:$0xf]
        %v847 = vld [vmem:[%s8 + $0x4] sm:$0xf]
        %v848 = vld [vmem:[%s8 + $0x8] sm:$0xf]
        %v849 = vld [vmem:[%s8 + $0xc] sm:$0xf]
        %v854 = vunpack.c.l.b16 %v846
        %v855 = vunpack.c.l.b16 %v847
        %v856 = vunpack.c.l.b16 %v848
        %v857 = vunpack.c.l.b16 %v849
        %v858 = vpack.c.b16 %v855, %v854
        %v859 = vpack.c.b16 %v857, %v856
        %862 = vmatprep.subr.bf16.mxu0 0
        %863 = vmatpush1.bf16.msra.mxu0 %v858
        %864 = vmatprep.subr.bf16.mxu0 0
        %865 = vmatpush1.bf16.msra.mxu0 %v859
        %866 = vmatprep.subr.bf16.mxu0 0
        %867 = vmatpush1.bf16.msra.mxu0 0
        %868 = vmatprep.subr.bf16.mxu0 0
        %869 = vmatpush1.bf16.msra.mxu0 0
        %870 = vmatprep.subr.bf16.mxu0 0
        %871 = vmatpush1.bf16.msra.mxu0 0
        %872 = vmatprep.subr.bf16.mxu0 0
        %873 = vmatpush1.bf16.msra.mxu0 0
        %874 = vmatprep.subr.bf16.mxu0 0
        %875 = vmatpush1.bf16.msra.mxu0 0
        %876 = vmatprep.subr.bf16.mxu0 0
        %877 = vmatpush1.bf16.msra.mxu0 0
        %878 = vmatprep.subr.bf16.mxu0 0
        %879 = vmatpush1.bf16.msra.mxu0 0
        %880 = vmatprep.subr.bf16.mxu0 0
        %881 = vmatpush1.bf16.msra.mxu0 0
        %882 = vmatprep.subr.bf16.mxu0 0
        %883 = vmatpush1.bf16.msra.mxu0 0
        %884 = vmatprep.subr.bf16.mxu0 0
        %885 = vmatpush1.bf16.msra.mxu0 0
        %886 = vmatprep.subr.bf16.mxu0 0
        %887 = vmatpush1.bf16.msra.mxu0 0
        %888 = vmatprep.subr.bf16.mxu0 0
        %889 = vmatpush1.bf16.msra.mxu0 0
        %890 = vmatprep.subr.bf16.mxu0 0
        %891 = vmatpush1.bf16.msra.mxu0 0
        %892 = vmatprep.subr.bf16.mxu0 0
        %893 = vmatpush1.bf16.msra.mxu0 0
        %894 = vmatprep.mubr.bf16.mxu0 0
        %895 = vmatmul.mubr.bf16.gmra.mrb[0].mxu0 %v792
        %v896 = vpop.f32.mrb[0].mxu0
        %v897 = vadd.f32 0.0, %v896
        %v898 = vpop.f32.mrb[0].mxu0
        %v899 = vpop.f32.mrb[0].mxu0
        %v900 = vadd.f32 0.0, %v899
        %v901 = vpop.f32.mrb[0].mxu0
        %902 = vmatprep.mubr.bf16.mxu0 0
        %903 = vmatmul.mubr.bf16.gmra.mrb[0].mxu0 %v795
        %v904 = vpop.f32.mrb[0].mxu0
        %v905 = vadd.f32 0.0, %v904
        %v906 = vpop.f32.mrb[0].mxu0
        %v907 = vpop.f32.mrb[0].mxu0
        %v908 = vadd.f32 0.0, %v907
        %v909 = vpop.f32.mrb[0].mxu0
        %910 = vdwg.mxu0
        %v911 = vmul.f32 %v769, 0.35355338
        %v912 = vmul.f32 %v772, 0.35355338
        %v913 = vpack.c.bf16 %v911, %v911
        %v914 = vpack.c.bf16 %v912, %v912
        %v915 = vpack.c.bf16 %v835, %v832
        %v916 = vpack.c.bf16 %v843, %v840
        %v917 = vpack.c.bf16 %v900, %v897
        %v918 = vpack.c.bf16 %v908, %v905
        %v920 = vsel %vm648, %v913, 0
        %v923 = vsel %vm648, %v915, 0
        %925 = vmatprep.subr.bf16.mxu0 0
        %926 = vmatpush1.bf16.xpose.msra.mxu0 %v923
        %927 = vmatprep.subr.bf16.mxu0 0
        %928 = vmatpush1.bf16.xpose.msra.mxu0 0
        %929 = vmatprep.subr.bf16.mxu0 0
        %930 = vmatpush1.bf16.xpose.msra.mxu0 0
        %931 = vmatprep.subr.bf16.mxu0 0
        %932 = vmatpush1.bf16.xpose.msra.mxu0 0
        %933 = vmatprep.subr.bf16.mxu0 0
        %934 = vmatpush1.bf16.xpose.msra.mxu0 0
        %935 = vmatprep.subr.bf16.mxu0 0
        %936 = vmatpush1.bf16.xpose.msra.mxu0 0
        %937 = vmatprep.subr.bf16.mxu0 0
        %938 = vmatpush1.bf16.xpose.msra.mxu0 0
        %939 = vmatprep.subr.bf16.mxu0 0
        %940 = vmatpush1.bf16.xpose.msra.mxu0 0
        %941 = vmatprep.subr.bf16.mxu0 0
        %942 = vmatpush1.bf16.xpose.msra.mxu0 0
        %943 = vmatprep.subr.bf16.mxu0 0
        %944 = vmatpush1.bf16.xpose.msra.mxu0 0
        %945 = vmatprep.subr.bf16.mxu0 0
        %946 = vmatpush1.bf16.xpose.msra.mxu0 0
        %947 = vmatprep.subr.bf16.mxu0 0
        %948 = vmatpush1.bf16.xpose.msra.mxu0 0
        %949 = vmatprep.subr.bf16.mxu0 0
        %950 = vmatpush1.bf16.xpose.msra.mxu0 0
        %951 = vmatprep.subr.bf16.mxu0 0
        %952 = vmatpush1.bf16.xpose.msra.mxu0 0
        %953 = vmatprep.subr.bf16.mxu0 0
        %954 = vmatpush1.bf16.xpose.msra.mxu0 0
        %955 = vmatprep.subr.bf16.mxu0 0
        %956 = vmatpush1.bf16.xpose.msra.mxu0 0
        %957 = vmatprep.mubr.bf16.mxu0 0
        %958 = vmatmul.mubr.bf16.gmra.mrb[0].mxu0 %v920
        %v959 = vpop.f32.mrb[0].mxu0
        %v960 = vadd.f32 0.0, %v959
        %v961 = vpop.f32.mrb[0].mxu0
        %v962 = vpop.f32.mrb[0].mxu0
        %v963 = vpop.f32.mrb[0].mxu0
        %964 = vdwg.mxu0
        %v966 = vsel %vm648, %v914, 0
        %v969 = vsel %vm648, %v916, 0
        %971 = vmatprep.subr.bf16.mxu0 0
        %972 = vmatpush1.bf16.xpose.msra.mxu0 %v969
        %973 = vmatprep.subr.bf16.mxu0 0
        %974 = vmatpush1.bf16.xpose.msra.mxu0 0
        %975 = vmatprep.subr.bf16.mxu0 0
        %976 = vmatpush1.bf16.xpose.msra.mxu0 0
        %977 = vmatprep.subr.bf16.mxu0 0
        %978 = vmatpush1.bf16.xpose.msra.mxu0 0
        %979 = vmatprep.subr.bf16.mxu0 0
        %980 = vmatpush1.bf16.xpose.msra.mxu0 0
        %981 = vmatprep.subr.bf16.mxu0 0
        %982 = vmatpush1.bf16.xpose.msra.mxu0 0
        %983 = vmatprep.subr.bf16.mxu0 0
        %984 = vmatpush1.bf16.xpose.msra.mxu0 0
        %985 = vmatprep.subr.bf16.mxu0 0
        %986 = vmatpush1.bf16.xpose.msra.mxu0 0
        %987 = vmatprep.subr.bf16.mxu0 0
        %988 = vmatpush1.bf16.xpose.msra.mxu0 0
        %989 = vmatprep.subr.bf16.mxu0 0
        %990 = vmatpush1.bf16.xpose.msra.mxu0 0
        %991 = vmatprep.subr.bf16.mxu0 0
        %992 = vmatpush1.bf16.xpose.msra.mxu0 0
        %993 = vmatprep.subr.bf16.mxu0 0
        %994 = vmatpush1.bf16.xpose.msra.mxu0 0
        %995 = vmatprep.subr.bf16.mxu0 0
        %996 = vmatpush1.bf16.xpose.msra.mxu0 0
        %997 = vmatprep.subr.bf16.mxu0 0
        %998 = vmatpush1.bf16.xpose.msra.mxu0 0
        %999 = vmatprep.subr.bf16.mxu0 0
        %1000 = vmatpush1.bf16.xpose.msra.mxu0 0
        %1001 = vmatprep.subr.bf16.mxu0 0
        %1002 = vmatpush1.bf16.xpose.msra.mxu0 0
        %1003 = vmatprep.mubr.bf16.mxu0 0
        %1004 = vmatmul.mubr.bf16.gmra.mrb[0].mxu0 %v966
        %v1005 = vpop.f32.mrb[0].mxu0
        %v1006 = vadd.f32 0.0, %v1005
        %v1007 = vpop.f32.mrb[0].mxu0
        %v1008 = vpop.f32.mrb[0].mxu0
        %v1009 = vpop.f32.mrb[0].mxu0
        %1010 = vdwg.mxu0
        %v1011 = vsel %vm651, 1, 0
        %v1012 = vsel %vm652, 1, 0
        %v1013 = vlaneseq
        %v1014 = vshrl.u32 %v1013, 7
        %v1015 = vsub.s32 0, %v1014
        %v1016 = vrot.slane %v1011, %v1015
        %v1017 = vlaneseq
        %v1018 = vshrl.u32 %v1017, 7
        %v1019 = vsub.s32 0, %v1018
        %v1020 = vrot.slane %v1012, %v1019
        %vm1021 = vcmp.eq.s32.totalorder %v1016, 1
        %vm1022 = vcmp.eq.s32.totalorder %v1020, 1
        %v1023 = vsel %vm1021, -1e+18, %v960
        %v1024 = vsel %vm1022, -1e+18, %v1006
        %v1025 = vadd.f32 %v1023, 0.0
        %v1026 = vadd.f32 %v1024, 0.0
        %vm1027 = vcmask 130048
        %v1028 = vsel %vm1027, %v1023, -inf
        %1029 = vmax.xlane.f32.xlu0 %v1028
        %v1030 = vpop.xlane.xlu0 %1029
        %v1031 = vsel %vm1027, %v1024, -inf
        %1032 = vmax.xlane.f32.xlu0 %v1031
        %v1033 = vpop.xlane.xlu0 %1032
        %v1034 = vsub.f32 %v1023, %v1030
        %v1035 = vsub.f32 %v1024, %v1033
        %v1036 = vmul.f32 %v1034, 1.442695
        %v1037 = vpow.pop %v1036
        %v1038 = vmul.f32 %v1035, 1.442695
        %v1039 = vpow.pop %v1038
        %v1040 = vsel %vm1027, %v1037, 0.0
        %1041 = vadd.xlane.f32.xlu0 %v1040
        %v1042 = vpop.xlane.xlu0 %1041
        %v1043 = vsel %vm1027, %v1039, 0.0
        %1044 = vadd.xlane.f32.xlu0 %v1043
        %v1045 = vpop.xlane.xlu0 %1044
        %v1046 = vrcp.pop %v1042
        %v1047 = vrcp.pop %v1045
        %v1048 = vmul.f32 %v1037, %v1046
        %v1049 = vmul.f32 %v1039, %v1047
        %v1050 = vpack.c.bf16 %v1048, %v1048
        %v1051 = vpack.c.bf16 %v1049, %v1049
        %v1053 = vsel %vm1027, %v1050, 0
        %1055 = vmatprep.subr.bf16.mxu0 0
        %1056 = vmatpush1.bf16.msra.mxu0 %v917
        %1057 = vmatprep.subr.bf16.mxu0 0
        %1058 = vmatpush1.bf16.msra.mxu0 0
        %1059 = vmatprep.subr.bf16.mxu0 0
        %1060 = vmatpush1.bf16.msra.mxu0 0
        %1061 = vmatprep.subr.bf16.mxu0 0
        %1062 = vmatpush1.bf16.msra.mxu0 0
        %1063 = vmatprep.subr.bf16.mxu0 0
        %1064 = vmatpush1.bf16.msra.mxu0 0
        %1065 = vmatprep.subr.bf16.mxu0 0
        %1066 = vmatpush1.bf16.msra.mxu0 0
        %1067 = vmatprep.subr.bf16.mxu0 0
        %1068 = vmatpush1.bf16.msra.mxu0 0
        %1069 = vmatprep.subr.bf16.mxu0 0
        %1070 = vmatpush1.bf16.msra.mxu0 0
        %1071 = vmatprep.subr.bf16.mxu0 0
        %1072 = vmatpush1.bf16.msra.mxu0 0
        %1073 = vmatprep.subr.bf16.mxu0 0
        %1074 = vmatpush1.bf16.msra.mxu0 0
        %1075 = vmatprep.subr.bf16.mxu0 0
        %1076 = vmatpush1.bf16.msra.mxu0 0
        %1077 = vmatprep.subr.bf16.mxu0 0
        %1078 = vmatpush1.bf16.msra.mxu0 0
        %1079 = vmatprep.subr.bf16.mxu0 0
        %1080 = vmatpush1.bf16.msra.mxu0 0
        %1081 = vmatprep.subr.bf16.mxu0 0
        %1082 = vmatpush1.bf16.msra.mxu0 0
        %1083 = vmatprep.subr.bf16.mxu0 0
        %1084 = vmatpush1.bf16.msra.mxu0 0
        %1085 = vmatprep.subr.bf16.mxu0 0
        %1086 = vmatpush1.bf16.msra.mxu0 0
        %1087 = vmatprep.mubr.bf16.mxu0 0
        %1088 = vmatmul.mubr.bf16.gmra.mrb[0].mxu0 %v1053
        %v1089 = vpop.f32.mrb[0].mxu0
        %v1090 = vadd.f32 0.0, %v1089
        %v1091 = vpop.f32.mrb[0].mxu0
        %v1092 = vpop.f32.mrb[0].mxu0
        %v1093 = vpop.f32.mrb[0].mxu0
        %1094 = vdwg.mxu0
        %v1096 = vsel %vm1027, %v1051, 0
        %1098 = vmatprep.subr.bf16.mxu0 0
        %1099 = vmatpush1.bf16.msra.mxu0 %v918
        %1100 = vmatprep.subr.bf16.mxu0 0
        %1101 = vmatpush1.bf16.msra.mxu0 0
        %1102 = vmatprep.subr.bf16.mxu0 0
        %1103 = vmatpush1.bf16.msra.mxu0 0
        %1104 = vmatprep.subr.bf16.mxu0 0
        %1105 = vmatpush1.bf16.msra.mxu0 0
        %1106 = vmatprep.subr.bf16.mxu0 0
        %1107 = vmatpush1.bf16.msra.mxu0 0
        %1108 = vmatprep.subr.bf16.mxu0 0
        %1109 = vmatpush1.bf16.msra.mxu0 0
        %1110 = vmatprep.subr.bf16.mxu0 0
        %1111 = vmatpush1.bf16.msra.mxu0 0
        %1112 = vmatprep.subr.bf16.mxu0 0
        %1113 = vmatpush1.bf16.msra.mxu0 0
        %1114 = vmatprep.subr.bf16.mxu0 0
        %1115 = vmatpush1.bf16.msra.mxu0 0
        %1116 = vmatprep.subr.bf16.mxu0 0
        %1117 = vmatpush1.bf16.msra.mxu0 0
        %1118 = vmatprep.subr.bf16.mxu0 0
        %1119 = vmatpush1.bf16.msra.mxu0 0
        %1120 = vmatprep.subr.bf16.mxu0 0
        %1121 = vmatpush1.bf16.msra.mxu0 0
        %1122 = vmatprep.subr.bf16.mxu0 0
        %1123 = vmatpush1.bf16.msra.mxu0 0
        %1124 = vmatprep.subr.bf16.mxu0 0
        %1125 = vmatpush1.bf16.msra.mxu0 0
        %1126 = vmatprep.subr.bf16.mxu0 0
        %1127 = vmatpush1.bf16.msra.mxu0 0
        %1128 = vmatprep.subr.bf16.mxu0 0
        %1129 = vmatpush1.bf16.msra.mxu0 0
        %1130 = vmatprep.mubr.bf16.mxu0 0
        %1131 = vmatmul.mubr.bf16.gmra.mrb[0].mxu0 %v1096
        %v1132 = vpop.f32.mrb[0].mxu0
        %v1133 = vadd.f32 0.0, %v1132
        %v1134 = vpop.f32.mrb[0].mxu0
        %v1135 = vpop.f32.mrb[0].mxu0
        %v1136 = vpop.f32.mrb[0].mxu0
        %1137 = vdwg.mxu0
        %1139 = vrot.lane.b32.xlu0 %v913, 120
        %v1140 = vpop.permute.xlu0 %1139
        %1142 = vrot.lane.b32.xlu0 %v915, 120
        %v1143 = vpop.permute.xlu0 %1142
        %v1145 = vsel %vm648, %v1140, 0
        %v1148 = vsel %vm648, %v1143, 0
        %1150 = vmatprep.subr.bf16.mxu0 0
        %1151 = vmatpush1.bf16.xpose.msra.mxu0 %v1148
        %1152 = vmatprep.subr.bf16.mxu0 0
        %1153 = vmatpush1.bf16.xpose.msra.mxu0 0
        %1154 = vmatprep.subr.bf16.mxu0 0
        %1155 = vmatpush1.bf16.xpose.msra.mxu0 0
        %1156 = vmatprep.subr.bf16.mxu0 0
        %1157 = vmatpush1.bf16.xpose.msra.mxu0 0
        %1158 = vmatprep.subr.bf16.mxu0 0
        %1159 = vmatpush1.bf16.xpose.msra.mxu0 0
        %1160 = vmatprep.subr.bf16.mxu0 0
        %1161 = vmatpush1.bf16.xpose.msra.mxu0 0
        %1162 = vmatprep.subr.bf16.mxu0 0
        %1163 = vmatpush1.bf16.xpose.msra.mxu0 0
        %1164 = vmatprep.subr.bf16.mxu0 0
        %1165 = vmatpush1.bf16.xpose.msra.mxu0 0
        %1166 = vmatprep.subr.bf16.mxu0 0
        %1167 = vmatpush1.bf16.xpose.msra.mxu0 0
        %1168 = vmatprep.subr.bf16.mxu0 0
        %1169 = vmatpush1.bf16.xpose.msra.mxu0 0
        %1170 = vmatprep.subr.bf16.mxu0 0
        %1171 = vmatpush1.bf16.xpose.msra.mxu0 0
        %1172 = vmatprep.subr.bf16.mxu0 0
        %1173 = vmatpush1.bf16.xpose.msra.mxu0 0
        %1174 = vmatprep.subr.bf16.mxu0 0
        %1175 = vmatpush1.bf16.xpose.msra.mxu0 0
        %1176 = vmatprep.subr.bf16.mxu0 0
        %1177 = vmatpush1.bf16.xpose.msra.mxu0 0
        %1178 = vmatprep.subr.bf16.mxu0 0
        %1179 = vmatpush1.bf16.xpose.msra.mxu0 0
        %1180 = vmatprep.subr.bf16.mxu0 0
        %1181 = vmatpush1.bf16.xpose.msra.mxu0 0
        %1182 = vmatprep.mubr.bf16.mxu0 0
        %1183 = vmatmul.mubr.bf16.gmra.mrb[0].mxu0 %v1145
        %v1184 = vpop.f32.mrb[0].mxu0
        %v1185 = vadd.f32 0.0, %v1184
        %v1186 = vpop.f32.mrb[0].mxu0
        %v1187 = vpop.f32.mrb[0].mxu0
        %v1188 = vpop.f32.mrb[0].mxu0
        %1189 = vdwg.mxu0
        %1191 = vrot.lane.b32.xlu0 %v914, 120
        %v1192 = vpop.permute.xlu0 %1191
        %1194 = vrot.lane.b32.xlu0 %v916, 120
        %v1195 = vpop.permute.xlu0 %1194
        %v1197 = vsel %vm648, %v1192, 0
        %v1200 = vsel %vm648, %v1195, 0
        %1202 = vmatprep.subr.bf16.mxu0 0
        %1203 = vmatpush1.bf16.xpose.msra.mxu0 %v1200
        %1204 = vmatprep.subr.bf16.mxu0 0
        %1205 = vmatpush1.bf16.xpose.msra.mxu0 0
        %1206 = vmatprep.subr.bf16.mxu0 0
        %1207 = vmatpush1.bf16.xpose.msra.mxu0 0
        %1208 = vmatprep.subr.bf16.mxu0 0
        %1209 = vmatpush1.bf16.xpose.msra.mxu0 0
        %1210 = vmatprep.subr.bf16.mxu0 0
        %1211 = vmatpush1.bf16.xpose.msra.mxu0 0
        %1212 = vmatprep.subr.bf16.mxu0 0
        %1213 = vmatpush1.bf16.xpose.msra.mxu0 0
        %1214 = vmatprep.subr.bf16.mxu0 0
        %1215 = vmatpush1.bf16.xpose.msra.mxu0 0
        %1216 = vmatprep.subr.bf16.mxu0 0
        %1217 = vmatpush1.bf16.xpose.msra.mxu0 0
        %1218 = vmatprep.subr.bf16.mxu0 0
        %1219 = vmatpush1.bf16.xpose.msra.mxu0 0
        %1220 = vmatprep.subr.bf16.mxu0 0
        %1221 = vmatpush1.bf16.xpose.msra.mxu0 0
        %1222 = vmatprep.subr.bf16.mxu0 0
        %1223 = vmatpush1.bf16.xpose.msra.mxu0 0
        %1224 = vmatprep.subr.bf16.mxu0 0
        %1225 = vmatpush1.bf16.xpose.msra.mxu0 0
        %1226 = vmatprep.subr.bf16.mxu0 0
        %1227 = vmatpush1.bf16.xpose.msra.mxu0 0
        %1228 = vmatprep.subr.bf16.mxu0 0
        %1229 = vmatpush1.bf16.xpose.msra.mxu0 0
        %1230 = vmatprep.subr.bf16.mxu0 0
        %1231 = vmatpush1.bf16.xpose.msra.mxu0 0
        %1232 = vmatprep.subr.bf16.mxu0 0
        %1233 = vmatpush1.bf16.xpose.msra.mxu0 0
        %1234 = vmatprep.mubr.bf16.mxu0 0
        %1235 = vmatmul.mubr.bf16.gmra.mrb[0].mxu0 %v1197
        %v1236 = vpop.f32.mrb[0].mxu0
        %v1237 = vadd.f32 0.0, %v1236
        %v1238 = vpop.f32.mrb[0].mxu0
        %v1239 = vpop.f32.mrb[0].mxu0
        %v1240 = vpop.f32.mrb[0].mxu0
        %1241 = vdwg.mxu0
        %v1242 = vsel %vm1021, -1e+18, %v1185
        %v1243 = vsel %vm1022, -1e+18, %v1237
        %v1244 = vadd.f32 %v1025, %v1242
        %v1245 = vadd.f32 %v1026, %v1243
        %v1246 = vsel %vm1027, %v1242, -inf
        %1247 = vmax.xlane.f32.xlu0 %v1246
        %v1248 = vpop.xlane.xlu0 %1247
        %v1249 = vsel %vm1027, %v1243, -inf
        %1250 = vmax.xlane.f32.xlu0 %v1249
        %v1251 = vpop.xlane.xlu0 %1250
        %v1252 = vsub.f32 %v1242, %v1248
        %v1253 = vsub.f32 %v1243, %v1251
        %v1254 = vmul.f32 %v1252, 1.442695
        %v1255 = vpow.pop %v1254
        %v1256 = vmul.f32 %v1253, 1.442695
        %v1257 = vpow.pop %v1256
        %v1258 = vsel %vm1027, %v1255, 0.0
        %1259 = vadd.xlane.f32.xlu0 %v1258
        %v1260 = vpop.xlane.xlu0 %1259
        %v1261 = vsel %vm1027, %v1257, 0.0
        %1262 = vadd.xlane.f32.xlu0 %v1261
        %v1263 = vpop.xlane.xlu0 %1262
        %v1264 = vrcp.pop %v1260
        %v1265 = vrcp.pop %v1263
        %v1266 = vmul.f32 %v1255, %v1264
        %v1267 = vmul.f32 %v1257, %v1265
        %v1268 = vpack.c.bf16 %v1266, %v1266
        %v1269 = vpack.c.bf16 %v1267, %v1267
        %1271 = vrot.lane.b32.xlu0 %v917, 120
        %v1272 = vpop.permute.xlu0 %1271
        %v1275 = vsel %vm1027, %v1268, 0
        %1277 = vmatprep.subr.bf16.mxu0 0
        %1278 = vmatpush1.bf16.msra.mxu0 %v1272
        %1279 = vmatprep.subr.bf16.mxu0 0
        %1280 = vmatpush1.bf16.msra.mxu0 0
        %1281 = vmatprep.subr.bf16.mxu0 0
        %1282 = vmatpush1.bf16.msra.mxu0 0
        %1283 = vmatprep.subr.bf16.mxu0 0
        %1284 = vmatpush1.bf16.msra.mxu0 0
        %1285 = vmatprep.subr.bf16.mxu0 0
        %1286 = vmatpush1.bf16.msra.mxu0 0
        %1287 = vmatprep.subr.bf16.mxu0 0
        %1288 = vmatpush1.bf16.msra.mxu0 0
        %1289 = vmatprep.subr.bf16.mxu0 0
        %1290 = vmatpush1.bf16.msra.mxu0 0
        %1291 = vmatprep.subr.bf16.mxu0 0
        %1292 = vmatpush1.bf16.msra.mxu0 0
        %1293 = vmatprep.subr.bf16.mxu0 0
        %1294 = vmatpush1.bf16.msra.mxu0 0
        %1295 = vmatprep.subr.bf16.mxu0 0
        %1296 = vmatpush1.bf16.msra.mxu0 0
        %1297 = vmatprep.subr.bf16.mxu0 0
        %1298 = vmatpush1.bf16.msra.mxu0 0
        %1299 = vmatprep.subr.bf16.mxu0 0
        %1300 = vmatpush1.bf16.msra.mxu0 0
        %1301 = vmatprep.subr.bf16.mxu0 0
        %1302 = vmatpush1.bf16.msra.mxu0 0
        %1303 = vmatprep.subr.bf16.mxu0 0
        %1304 = vmatpush1.bf16.msra.mxu0 0
        %1305 = vmatprep.subr.bf16.mxu0 0
        %1306 = vmatpush1.bf16.msra.mxu0 0
        %1307 = vmatprep.subr.bf16.mxu0 0
        %1308 = vmatpush1.bf16.msra.mxu0 0
        %1309 = vmatprep.mubr.bf16.mxu0 0
        %1310 = vmatmul.mubr.bf16.gmra.mrb[0].mxu0 %v1275
        %v1311 = vpop.f32.mrb[0].mxu0
        %v1312 = vadd.f32 0.0, %v1311
        %v1313 = vpop.f32.mrb[0].mxu0
        %v1314 = vpop.f32.mrb[0].mxu0
        %v1315 = vpop.f32.mrb[0].mxu0
        %1316 = vdwg.mxu0
        %1318 = vrot.lane.b32.xlu0 %v918, 120
        %v1319 = vpop.permute.xlu0 %1318
        %v1322 = vsel %vm1027, %v1269, 0
        %1324 = vmatprep.subr.bf16.mxu0 0
        %1325 = vmatpush1.bf16.msra.mxu0 %v1319
        %1326 = vmatprep.subr.bf16.mxu0 0
        %1327 = vmatpush1.bf16.msra.mxu0 0
        %1328 = vmatprep.subr.bf16.mxu0 0
        %1329 = vmatpush1.bf16.msra.mxu0 0
        %1330 = vmatprep.subr.bf16.mxu0 0
        %1331 = vmatpush1.bf16.msra.mxu0 0
        %1332 = vmatprep.subr.bf16.mxu0 0
        %1333 = vmatpush1.bf16.msra.mxu0 0
        %1334 = vmatprep.subr.bf16.mxu0 0
        %1335 = vmatpush1.bf16.msra.mxu0 0
        %1336 = vmatprep.subr.bf16.mxu0 0
        %1337 = vmatpush1.bf16.msra.mxu0 0
        %1338 = vmatprep.subr.bf16.mxu0 0
        %1339 = vmatpush1.bf16.msra.mxu0 0
        %1340 = vmatprep.subr.bf16.mxu0 0
        %1341 = vmatpush1.bf16.msra.mxu0 0
        %1342 = vmatprep.subr.bf16.mxu0 0
        %1343 = vmatpush1.bf16.msra.mxu0 0
        %1344 = vmatprep.subr.bf16.mxu0 0
        %1345 = vmatpush1.bf16.msra.mxu0 0
        %1346 = vmatprep.subr.bf16.mxu0 0
        %1347 = vmatpush1.bf16.msra.mxu0 0
        %1348 = vmatprep.subr.bf16.mxu0 0
        %1349 = vmatpush1.bf16.msra.mxu0 0
        %1350 = vmatprep.subr.bf16.mxu0 0
        %1351 = vmatpush1.bf16.msra.mxu0 0
        %1352 = vmatprep.subr.bf16.mxu0 0
        %1353 = vmatpush1.bf16.msra.mxu0 0
        %1354 = vmatprep.subr.bf16.mxu0 0
        %1355 = vmatpush1.bf16.msra.mxu0 0
        %1356 = vmatprep.mubr.bf16.mxu0 0
        %1357 = vmatmul.mubr.bf16.gmra.mrb[0].mxu0 %v1322
        %v1358 = vpop.f32.mrb[0].mxu0
        %v1359 = vadd.f32 0.0, %v1358
        %v1360 = vpop.f32.mrb[0].mxu0
        %v1361 = vpop.f32.mrb[0].mxu0
        %v1362 = vpop.f32.mrb[0].mxu0
        %1363 = vdwg.mxu0
        %1364 = vrot.lane.b32.xlu0 %v913, 112
        %v1365 = vpop.permute.xlu0 %1364
        %1366 = vrot.lane.b32.xlu0 %v915, 112
        %v1367 = vpop.permute.xlu0 %1366
        %v1369 = vsel %vm648, %v1365, 0
        %v1372 = vsel %vm648, %v1367, 0
        %1374 = vmatprep.subr.bf16.mxu0 0
        %1375 = vmatpush1.bf16.xpose.msra.mxu0 %v1372
        %1376 = vmatprep.subr.bf16.mxu0 0
        %1377 = vmatpush1.bf16.xpose.msra.mxu0 0
        %1378 = vmatprep.subr.bf16.mxu0 0
        %1379 = vmatpush1.bf16.xpose.msra.mxu0 0
        %1380 = vmatprep.subr.bf16.mxu0 0
        %1381 = vmatpush1.bf16.xpose.msra.mxu0 0
        %1382 = vmatprep.subr.bf16.mxu0 0
        %1383 = vmatpush1.bf16.xpose.msra.mxu0 0
        %1384 = vmatprep.subr.bf16.mxu0 0
        %1385 = vmatpush1.bf16.xpose.msra.mxu0 0
        %1386 = vmatprep.subr.bf16.mxu0 0
        %1387 = vmatpush1.bf16.xpose.msra.mxu0 0
        %1388 = vmatprep.subr.bf16.mxu0 0
        %1389 = vmatpush1.bf16.xpose.msra.mxu0 0
        %1390 = vmatprep.subr.bf16.mxu0 0
        %1391 = vmatpush1.bf16.xpose.msra.mxu0 0
        %1392 = vmatprep.subr.bf16.mxu0 0
        %1393 = vmatpush1.bf16.xpose.msra.mxu0 0
        %1394 = vmatprep.subr.bf16.mxu0 0
        %1395 = vmatpush1.bf16.xpose.msra.mxu0 0
        %1396 = vmatprep.subr.bf16.mxu0 0
        %1397 = vmatpush1.bf16.xpose.msra.mxu0 0
        %1398 = vmatprep.subr.bf16.mxu0 0
        %1399 = vmatpush1.bf16.xpose.msra.mxu0 0
        %1400 = vmatprep.subr.bf16.mxu0 0
        %1401 = vmatpush1.bf16.xpose.msra.mxu0 0
        %1402 = vmatprep.subr.bf16.mxu0 0
        %1403 = vmatpush1.bf16.xpose.msra.mxu0 0
        %1404 = vmatprep.subr.bf16.mxu0 0
        %1405 = vmatpush1.bf16.xpose.msra.mxu0 0
        %1406 = vmatprep.mubr.bf16.mxu0 0
        %1407 = vmatmul.mubr.bf16.gmra.mrb[0].mxu0 %v1369
        %v1408 = vpop.f32.mrb[0].mxu0
        %v1409 = vadd.f32 0.0, %v1408
        %v1410 = vpop.f32.mrb[0].mxu0
        %v1411 = vpop.f32.mrb[0].mxu0
        %v1412 = vpop.f32.mrb[0].mxu0
        %1413 = vdwg.mxu0
        %1414 = vrot.lane.b32.xlu0 %v914, 112
        %v1415 = vpop.permute.xlu0 %1414
        %1416 = vrot.lane.b32.xlu0 %v916, 112
        %v1417 = vpop.permute.xlu0 %1416
        %v1419 = vsel %vm648, %v1415, 0
        %v1422 = vsel %vm648, %v1417, 0
        %1424 = vmatprep.subr.bf16.mxu0 0
        %1425 = vmatpush1.bf16.xpose.msra.mxu0 %v1422
        %1426 = vmatprep.subr.bf16.mxu0 0
        %1427 = vmatpush1.bf16.xpose.msra.mxu0 0
        %1428 = vmatprep.subr.bf16.mxu0 0
        %1429 = vmatpush1.bf16.xpose.msra.mxu0 0
        %1430 = vmatprep.subr.bf16.mxu0 0
        %1431 = vmatpush1.bf16.xpose.msra.mxu0 0
        %1432 = vmatprep.subr.bf16.mxu0 0
        %1433 = vmatpush1.bf16.xpose.msra.mxu0 0
        %1434 = vmatprep.subr.bf16.mxu0 0
        %1435 = vmatpush1.bf16.xpose.msra.mxu0 0
        %1436 = vmatprep.subr.bf16.mxu0 0
        %1437 = vmatpush1.bf16.xpose.msra.mxu0 0
        %1438 = vmatprep.subr.bf16.mxu0 0
        %1439 = vmatpush1.bf16.xpose.msra.mxu0 0
        %1440 = vmatprep.subr.bf16.mxu0 0
        %1441 = vmatpush1.bf16.xpose.msra.mxu0 0
        %1442 = vmatprep.subr.bf16.mxu0 0
        %1443 = vmatpush1.bf16.xpose.msra.mxu0 0
        %1444 = vmatprep.subr.bf16.mxu0 0
        %1445 = vmatpush1.bf16.xpose.msra.mxu0 0
        %1446 = vmatprep.subr.bf16.mxu0 0
        %1447 = vmatpush1.bf16.xpose.msra.mxu0 0
        %1448 = vmatprep.subr.bf16.mxu0 0
        %1449 = vmatpush1.bf16.xpose.msra.mxu0 0
        %1450 = vmatprep.subr.bf16.mxu0 0
        %1451 = vmatpush1.bf16.xpose.msra.mxu0 0
        %1452 = vmatprep.subr.bf16.mxu0 0
        %1453 = vmatpush1.bf16.xpose.msra.mxu0 0
        %1454 = vmatprep.subr.bf16.mxu0 0
        %1455 = vmatpush1.bf16.xpose.msra.mxu0 0
        %1456 = vmatprep.mubr.bf16.mxu0 0
        %1457 = vmatmul.mubr.bf16.gmra.mrb[0].mxu0 %v1419
        %v1458 = vpop.f32.mrb[0].mxu0
        %v1459 = vadd.f32 0.0, %v1458
        %v1460 = vpop.f32.mrb[0].mxu0
        %v1461 = vpop.f32.mrb[0].mxu0
        %v1462 = vpop.f32.mrb[0].mxu0
        %1463 = vdwg.mxu0
        %v1464 = vsel %vm1021, -1e+18, %v1409
        %v1465 = vsel %vm1022, -1e+18, %v1459
        %v1466 = vadd.f32 %v1244, %v1464
        %v1467 = vadd.f32 %v1245, %v1465
        %v1468 = vsel %vm1027, %v1464, -inf
        %1469 = vmax.xlane.f32.xlu0 %v1468
        %v1470 = vpop.xlane.xlu0 %1469
        %v1471 = vsel %vm1027, %v1465, -inf
        %1472 = vmax.xlane.f32.xlu0 %v1471
        %v1473 = vpop.xlane.xlu0 %1472
        %v1474 = vsub.f32 %v1464, %v1470
        %v1475 = vsub.f32 %v1465, %v1473
        %v1476 = vmul.f32 %v1474, 1.442695
        %v1477 = vpow.pop %v1476
        %v1478 = vmul.f32 %v1475, 1.442695
        %v1479 = vpow.pop %v1478
        %v1480 = vsel %vm1027, %v1477, 0.0
        %1481 = vadd.xlane.f32.xlu0 %v1480
        %v1482 = vpop.xlane.xlu0 %1481
        %v1483 = vsel %vm1027, %v1479, 0.0
        %1484 = vadd.xlane.f32.xlu0 %v1483
        %v1485 = vpop.xlane.xlu0 %1484
        %v1486 = vrcp.pop %v1482
        %v1487 = vrcp.pop %v1485
        %v1488 = vmul.f32 %v1477, %v1486
        %v1489 = vmul.f32 %v1479, %v1487
        %v1490 = vpack.c.bf16 %v1488, %v1488
        %v1491 = vpack.c.bf16 %v1489, %v1489
        %1492 = vrot.lane.b32.xlu0 %v917, 112
        %v1493 = vpop.permute.xlu0 %1492
        %v1496 = vsel %vm1027, %v1490, 0
        %1498 = vmatprep.subr.bf16.mxu0 0
        %1499 = vmatpush1.bf16.msra.mxu0 %v1493
        %1500 = vmatprep.subr.bf16.mxu0 0
        %1501 = vmatpush1.bf16.msra.mxu0 0
        %1502 = vmatprep.subr.bf16.mxu0 0
        %1503 = vmatpush1.bf16.msra.mxu0 0
        %1504 = vmatprep.subr.bf16.mxu0 0
        %1505 = vmatpush1.bf16.msra.mxu0 0
        %1506 = vmatprep.subr.bf16.mxu0 0
        %1507 = vmatpush1.bf16.msra.mxu0 0
        %1508 = vmatprep.subr.bf16.mxu0 0
        %1509 = vmatpush1.bf16.msra.mxu0 0
        %1510 = vmatprep.subr.bf16.mxu0 0
        %1511 = vmatpush1.bf16.msra.mxu0 0
        %1512 = vmatprep.subr.bf16.mxu0 0
        %1513 = vmatpush1.bf16.msra.mxu0 0
        %1514 = vmatprep.subr.bf16.mxu0 0
        %1515 = vmatpush1.bf16.msra.mxu0 0
        %1516 = vmatprep.subr.bf16.mxu0 0
        %1517 = vmatpush1.bf16.msra.mxu0 0
        %1518 = vmatprep.subr.bf16.mxu0 0
        %1519 = vmatpush1.bf16.msra.mxu0 0
        %1520 = vmatprep.subr.bf16.mxu0 0
        %1521 = vmatpush1.bf16.msra.mxu0 0
        %1522 = vmatprep.subr.bf16.mxu0 0
        %1523 = vmatpush1.bf16.msra.mxu0 0
        %1524 = vmatprep.subr.bf16.mxu0 0
        %1525 = vmatpush1.bf16.msra.mxu0 0
        %1526 = vmatprep.subr.bf16.mxu0 0
        %1527 = vmatpush1.bf16.msra.mxu0 0
        %1528 = vmatprep.subr.bf16.mxu0 0
        %1529 = vmatpush1.bf16.msra.mxu0 0
        %1530 = vmatprep.mubr.bf16.mxu0 0
        %1531 = vmatmul.mubr.bf16.gmra.mrb[0].mxu0 %v1496
        %v1532 = vpop.f32.mrb[0].mxu0
        %v1533 = vadd.f32 0.0, %v1532
        %v1534 = vpop.f32.mrb[0].mxu0
        %v1535 = vpop.f32.mrb[0].mxu0
        %v1536 = vpop.f32.mrb[0].mxu0
        %1537 = vdwg.mxu0
        %1538 = vrot.lane.b32.xlu0 %v918, 112
        %v1539 = vpop.permute.xlu0 %1538
        %v1542 = vsel %vm1027, %v1491, 0
        %1544 = vmatprep.subr.bf16.mxu0 0
        %1545 = vmatpush1.bf16.msra.mxu0 %v1539
        %1546 = vmatprep.subr.bf16.mxu0 0
        %1547 = vmatpush1.bf16.msra.mxu0 0
        %1548 = vmatprep.subr.bf16.mxu0 0
        %1549 = vmatpush1.bf16.msra.mxu0 0
        %1550 = vmatprep.subr.bf16.mxu0 0
        %1551 = vmatpush1.bf16.msra.mxu0 0
        %1552 = vmatprep.subr.bf16.mxu0 0
        %1553 = vmatpush1.bf16.msra.mxu0 0
        %1554 = vmatprep.subr.bf16.mxu0 0
        %1555 = vmatpush1.bf16.msra.mxu0 0
        %1556 = vmatprep.subr.bf16.mxu0 0
        %1557 = vmatpush1.bf16.msra.mxu0 0
        %1558 = vmatprep.subr.bf16.mxu0 0
        %1559 = vmatpush1.bf16.msra.mxu0 0
        %1560 = vmatprep.subr.bf16.mxu0 0
        %1561 = vmatpush1.bf16.msra.mxu0 0
        %1562 = vmatprep.subr.bf16.mxu0 0
        %1563 = vmatpush1.bf16.msra.mxu0 0
        %1564 = vmatprep.subr.bf16.mxu0 0
        %1565 = vmatpush1.bf16.msra.mxu0 0
        %1566 = vmatprep.subr.bf16.mxu0 0
        %1567 = vmatpush1.bf16.msra.mxu0 0
        %1568 = vmatprep.subr.bf16.mxu0 0
        %1569 = vmatpush1.bf16.msra.mxu0 0
        %1570 = vmatprep.subr.bf16.mxu0 0
        %1571 = vmatpush1.bf16.msra.mxu0 0
        %1572 = vmatprep.subr.bf16.mxu0 0
        %1573 = vmatpush1.bf16.msra.mxu0 0
        %1574 = vmatprep.subr.bf16.mxu0 0
        %1575 = vmatpush1.bf16.msra.mxu0 0
        %1576 = vmatprep.mubr.bf16.mxu0 0
        %1577 = vmatmul.mubr.bf16.gmra.mrb[0].mxu0 %v1542
        %v1578 = vpop.f32.mrb[0].mxu0
        %v1579 = vadd.f32 0.0, %v1578
        %v1580 = vpop.f32.mrb[0].mxu0
        %v1581 = vpop.f32.mrb[0].mxu0
        %v1582 = vpop.f32.mrb[0].mxu0
        %1583 = vdwg.mxu0
        %1584 = vrot.lane.b32.xlu0 %v913, 104
        %v1585 = vpop.permute.xlu0 %1584
        %1586 = vrot.lane.b32.xlu0 %v915, 104
        %v1587 = vpop.permute.xlu0 %1586
        %v1589 = vsel %vm648, %v1585, 0
        %v1592 = vsel %vm648, %v1587, 0
        %1594 = vmatprep.subr.bf16.mxu0 0
        %1595 = vmatpush1.bf16.xpose.msra.mxu0 %v1592
        %1596 = vmatprep.subr.bf16.mxu0 0
        %1597 = vmatpush1.bf16.xpose.msra.mxu0 0
        %1598 = vmatprep.subr.bf16.mxu0 0
        %1599 = vmatpush1.bf16.xpose.msra.mxu0 0
        %1600 = vmatprep.subr.bf16.mxu0 0
        %1601 = vmatpush1.bf16.xpose.msra.mxu0 0
        %1602 = vmatprep.subr.bf16.mxu0 0
        %1603 = vmatpush1.bf16.xpose.msra.mxu0 0
        %1604 = vmatprep.subr.bf16.mxu0 0
        %1605 = vmatpush1.bf16.xpose.msra.mxu0 0
        %1606 = vmatprep.subr.bf16.mxu0 0
        %1607 = vmatpush1.bf16.xpose.msra.mxu0 0
        %1608 = vmatprep.subr.bf16.mxu0 0
        %1609 = vmatpush1.bf16.xpose.msra.mxu0 0
        %1610 = vmatprep.subr.bf16.mxu0 0
        %1611 = vmatpush1.bf16.xpose.msra.mxu0 0
        %1612 = vmatprep.subr.bf16.mxu0 0
        %1613 = vmatpush1.bf16.xpose.msra.mxu0 0
        %1614 = vmatprep.subr.bf16.mxu0 0
        %1615 = vmatpush1.bf16.xpose.msra.mxu0 0
        %1616 = vmatprep.subr.bf16.mxu0 0
        %1617 = vmatpush1.bf16.xpose.msra.mxu0 0
        %1618 = vmatprep.subr.bf16.mxu0 0
        %1619 = vmatpush1.bf16.xpose.msra.mxu0 0
        %1620 = vmatprep.subr.bf16.mxu0 0
        %1621 = vmatpush1.bf16.xpose.msra.mxu0 0
        %1622 = vmatprep.subr.bf16.mxu0 0
        %1623 = vmatpush1.bf16.xpose.msra.mxu0 0
        %1624 = vmatprep.subr.bf16.mxu0 0
        %1625 = vmatpush1.bf16.xpose.msra.mxu0 0
        %1626 = vmatprep.mubr.bf16.mxu0 0
        %1627 = vmatmul.mubr.bf16.gmra.mrb[0].mxu0 %v1589
        %v1628 = vpop.f32.mrb[0].mxu0
        %v1629 = vadd.f32 0.0, %v1628
        %v1630 = vpop.f32.mrb[0].mxu0
        %v1631 = vpop.f32.mrb[0].mxu0
        %v1632 = vpop.f32.mrb[0].mxu0
        %1633 = vdwg.mxu0
        %1634 = vrot.lane.b32.xlu0 %v914, 104
        %v1635 = vpop.permute.xlu0 %1634
        %1636 = vrot.lane.b32.xlu0 %v916, 104
        %v1637 = vpop.permute.xlu0 %1636
        %v1639 = vsel %vm648, %v1635, 0
        %v1642 = vsel %vm648, %v1637, 0
        %1644 = vmatprep.subr.bf16.mxu0 0
        %1645 = vmatpush1.bf16.xpose.msra.mxu0 %v1642
        %1646 = vmatprep.subr.bf16.mxu0 0
        %1647 = vmatpush1.bf16.xpose.msra.mxu0 0
        %1648 = vmatprep.subr.bf16.mxu0 0
        %1649 = vmatpush1.bf16.xpose.msra.mxu0 0
        %1650 = vmatprep.subr.bf16.mxu0 0
        %1651 = vmatpush1.bf16.xpose.msra.mxu0 0
        %1652 = vmatprep.subr.bf16.mxu0 0
        %1653 = vmatpush1.bf16.xpose.msra.mxu0 0
        %1654 = vmatprep.subr.bf16.mxu0 0
        %1655 = vmatpush1.bf16.xpose.msra.mxu0 0
        %1656 = vmatprep.subr.bf16.mxu0 0
        %1657 = vmatpush1.bf16.xpose.msra.mxu0 0
        %1658 = vmatprep.subr.bf16.mxu0 0
        %1659 = vmatpush1.bf16.xpose.msra.mxu0 0
        %1660 = vmatprep.subr.bf16.mxu0 0
        %1661 = vmatpush1.bf16.xpose.msra.mxu0 0
        %1662 = vmatprep.subr.bf16.mxu0 0
        %1663 = vmatpush1.bf16.xpose.msra.mxu0 0
        %1664 = vmatprep.subr.bf16.mxu0 0
        %1665 = vmatpush1.bf16.xpose.msra.mxu0 0
        %1666 = vmatprep.subr.bf16.mxu0 0
        %1667 = vmatpush1.bf16.xpose.msra.mxu0 0
        %1668 = vmatprep.subr.bf16.mxu0 0
        %1669 = vmatpush1.bf16.xpose.msra.mxu0 0
        %1670 = vmatprep.subr.bf16.mxu0 0
        %1671 = vmatpush1.bf16.xpose.msra.mxu0 0
        %1672 = vmatprep.subr.bf16.mxu0 0
        %1673 = vmatpush1.bf16.xpose.msra.mxu0 0
        %1674 = vmatprep.subr.bf16.mxu0 0
        %1675 = vmatpush1.bf16.xpose.msra.mxu0 0
        %1676 = vmatprep.mubr.bf16.mxu0 0
        %1677 = vmatmul.mubr.bf16.gmra.mrb[0].mxu0 %v1639
        %v1678 = vpop.f32.mrb[0].mxu0
        %v1679 = vadd.f32 0.0, %v1678
        %v1680 = vpop.f32.mrb[0].mxu0
        %v1681 = vpop.f32.mrb[0].mxu0
        %v1682 = vpop.f32.mrb[0].mxu0
        %1683 = vdwg.mxu0
        %v1684 = vsel %vm1021, -1e+18, %v1629
        %v1685 = vsel %vm1022, -1e+18, %v1679
        %v1686 = vadd.f32 %v1466, %v1684
        %v1687 = vadd.f32 %v1467, %v1685
        %v1688 = vsel %vm1027, %v1684, -inf
        %1689 = vmax.xlane.f32.xlu0 %v1688
        %v1690 = vpop.xlane.xlu0 %1689
        %v1691 = vsel %vm1027, %v1685, -inf
        %1692 = vmax.xlane.f32.xlu0 %v1691
        %v1693 = vpop.xlane.xlu0 %1692
        %v1694 = vsub.f32 %v1684, %v1690
        %v1695 = vsub.f32 %v1685, %v1693
        %v1696 = vmul.f32 %v1694, 1.442695
        %v1697 = vpow.pop %v1696
        %v1698 = vmul.f32 %v1695, 1.442695
        %v1699 = vpow.pop %v1698
        %v1700 = vsel %vm1027, %v1697, 0.0
        %1701 = vadd.xlane.f32.xlu0 %v1700
        %v1702 = vpop.xlane.xlu0 %1701
        %v1703 = vsel %vm1027, %v1699, 0.0
        %1704 = vadd.xlane.f32.xlu0 %v1703
        %v1705 = vpop.xlane.xlu0 %1704
        %v1706 = vrcp.pop %v1702
        %v1707 = vrcp.pop %v1705
        %v1708 = vmul.f32 %v1697, %v1706
        %v1709 = vmul.f32 %v1699, %v1707
        %v1710 = vpack.c.bf16 %v1708, %v1708
        %v1711 = vpack.c.bf16 %v1709, %v1709
        %1712 = vrot.lane.b32.xlu0 %v917, 104
        %v1713 = vpop.permute.xlu0 %1712
        %v1716 = vsel %vm1027, %v1710, 0
        %1718 = vmatprep.subr.bf16.mxu0 0
        %1719 = vmatpush1.bf16.msra.mxu0 %v1713
        %1720 = vmatprep.subr.bf16.mxu0 0
        %1721 = vmatpush1.bf16.msra.mxu0 0
        %1722 = vmatprep.subr.bf16.mxu0 0
        %1723 = vmatpush1.bf16.msra.mxu0 0
        %1724 = vmatprep.subr.bf16.mxu0 0
        %1725 = vmatpush1.bf16.msra.mxu0 0
        %1726 = vmatprep.subr.bf16.mxu0 0
        %1727 = vmatpush1.bf16.msra.mxu0 0
        %1728 = vmatprep.subr.bf16.mxu0 0
        %1729 = vmatpush1.bf16.msra.mxu0 0
        %1730 = vmatprep.subr.bf16.mxu0 0
        %1731 = vmatpush1.bf16.msra.mxu0 0
        %1732 = vmatprep.subr.bf16.mxu0 0
        %1733 = vmatpush1.bf16.msra.mxu0 0
        %1734 = vmatprep.subr.bf16.mxu0 0
        %1735 = vmatpush1.bf16.msra.mxu0 0
        %1736 = vmatprep.subr.bf16.mxu0 0
        %1737 = vmatpush1.bf16.msra.mxu0 0
        %1738 = vmatprep.subr.bf16.mxu0 0
        %1739 = vmatpush1.bf16.msra.mxu0 0
        %1740 = vmatprep.subr.bf16.mxu0 0
        %1741 = vmatpush1.bf16.msra.mxu0 0
        %1742 = vmatprep.subr.bf16.mxu0 0
        %1743 = vmatpush1.bf16.msra.mxu0 0
        %1744 = vmatprep.subr.bf16.mxu0 0
        %1745 = vmatpush1.bf16.msra.mxu0 0
        %1746 = vmatprep.subr.bf16.mxu0 0
        %1747 = vmatpush1.bf16.msra.mxu0 0
        %1748 = vmatprep.subr.bf16.mxu0 0
        %1749 = vmatpush1.bf16.msra.mxu0 0
        %1750 = vmatprep.mubr.bf16.mxu0 0
        %1751 = vmatmul.mubr.bf16.gmra.mrb[0].mxu0 %v1716
        %v1752 = vpop.f32.mrb[0].mxu0
        %v1753 = vadd.f32 0.0, %v1752
        %v1754 = vpop.f32.mrb[0].mxu0
        %v1755 = vpop.f32.mrb[0].mxu0
        %v1756 = vpop.f32.mrb[0].mxu0
        %1757 = vdwg.mxu0
        %1758 = vrot.lane.b32.xlu0 %v918, 104
        %v1759 = vpop.permute.xlu0 %1758
        %v1762 = vsel %vm1027, %v1711, 0
        %1764 = vmatprep.subr.bf16.mxu0 0
        %1765 = vmatpush1.bf16.msra.mxu0 %v1759
        %1766 = vmatprep.subr.bf16.mxu0 0
        %1767 = vmatpush1.bf16.msra.mxu0 0
        %1768 = vmatprep.subr.bf16.mxu0 0
        %1769 = vmatpush1.bf16.msra.mxu0 0
        %1770 = vmatprep.subr.bf16.mxu0 0
        %1771 = vmatpush1.bf16.msra.mxu0 0
        %1772 = vmatprep.subr.bf16.mxu0 0
        %1773 = vmatpush1.bf16.msra.mxu0 0
        %1774 = vmatprep.subr.bf16.mxu0 0
        %1775 = vmatpush1.bf16.msra.mxu0 0
        %1776 = vmatprep.subr.bf16.mxu0 0
        %1777 = vmatpush1.bf16.msra.mxu0 0
        %1778 = vmatprep.subr.bf16.mxu0 0
        %1779 = vmatpush1.bf16.msra.mxu0 0
        %1780 = vmatprep.subr.bf16.mxu0 0
        %1781 = vmatpush1.bf16.msra.mxu0 0
        %1782 = vmatprep.subr.bf16.mxu0 0
        %1783 = vmatpush1.bf16.msra.mxu0 0
        %1784 = vmatprep.subr.bf16.mxu0 0
        %1785 = vmatpush1.bf16.msra.mxu0 0
        %1786 = vmatprep.subr.bf16.mxu0 0
        %1787 = vmatpush1.bf16.msra.mxu0 0
        %1788 = vmatprep.subr.bf16.mxu0 0
        %1789 = vmatpush1.bf16.msra.mxu0 0
        %1790 = vmatprep.subr.bf16.mxu0 0
        %1791 = vmatpush1.bf16.msra.mxu0 0
        %1792 = vmatprep.subr.bf16.mxu0 0
        %1793 = vmatpush1.bf16.msra.mxu0 0
        %1794 = vmatprep.subr.bf16.mxu0 0
        %1795 = vmatpush1.bf16.msra.mxu0 0
        %1796 = vmatprep.mubr.bf16.mxu0 0
        %1797 = vmatmul.mubr.bf16.gmra.mrb[0].mxu0 %v1762
        %v1798 = vpop.f32.mrb[0].mxu0
        %v1799 = vadd.f32 0.0, %v1798
        %v1800 = vpop.f32.mrb[0].mxu0
        %v1801 = vpop.f32.mrb[0].mxu0
        %v1802 = vpop.f32.mrb[0].mxu0
        %1803 = vdwg.mxu0
        %1806 = vrot.lane.b32.xlu0 %v1312, 8
        %v1807 = vpop.permute.xlu0 %1806
        %1808 = vrot.lane.b32.xlu0 %v1359, 8
        %v1809 = vpop.permute.xlu0 %1808
        %1814 = vrot.lane.b32.xlu0 %v1533, 16
        %v1815 = vpop.permute.xlu0 %1814
        %1816 = vrot.lane.b32.xlu0 %v1579, 16
        %v1817 = vpop.permute.xlu0 %1816
        %1822 = vrot.lane.b32.xlu0 %v1753, 24
        %v1823 = vpop.permute.xlu0 %1822
        %1824 = vrot.lane.b32.xlu0 %v1799, 24
        %v1825 = vpop.permute.xlu0 %1824
        %v1828 = vsel %vm648, %v1090, %v1807
        %v1829 = vsel %vm648, %v1133, %v1809
        %v1830 = vsel %vm1027, %v1828, %v1815
        %v1831 = vsel %vm1027, %v1829, %v1817
        %vm1832 = vcmask 195584
        %v1833 = vsel %vm1832, %v1830, %v1823
        %v1834 = vsel %vm1832, %v1831, %v1825
        %v1835 = vmul.f32 %v1686, 0.25
        %v1836 = vmul.f32 %v1687, 0.25
        %1837 = vst.msk [vmem:[%s599] sm:$0xff] %vm1027, %v1835
        %1838 = vst.msk [vmem:[%s599 + $0x8] sm:$0xff] %vm1027, %v1836
        %v1839 = vpack.c.bf16 %v1834, %v1833
        %v1840 = vld [vmem:[%s9] sm:$0xf]
        %v1841 = vld [vmem:[%s9 + $0x4] sm:$0xf]
        %v1842 = vld [vmem:[%s9 + $0x8] sm:$0xf]
        %v1843 = vld [vmem:[%s9 + $0xc] sm:$0xf]
        %v1848 = vunpack.c.l.b16 %v1840
        %v1849 = vunpack.c.l.b16 %v1841
        %v1850 = vunpack.c.l.b16 %v1842
        %v1851 = vunpack.c.l.b16 %v1843
        %v1852 = vpack.c.b16 %v1849, %v1848
        %v1853 = vpack.c.b16 %v1851, %v1850
        %v1857 = vsel %vm655, %v1839, 0
        %1859 = vmatprep.subr.bf16.mxu0 0
        %1860 = vmatpush1.bf16.msra.mxu0 %v1852
        %1861 = vmatprep.subr.bf16.mxu0 0
        %1862 = vmatpush1.bf16.msra.mxu0 %v1853
        %1863 = vmatprep.subr.bf16.mxu0 0
        %1864 = vmatpush1.bf16.msra.mxu0 0
        %1865 = vmatprep.subr.bf16.mxu0 0
        %1866 = vmatpush1.bf16.msra.mxu0 0
        %1867 = vmatprep.subr.bf16.mxu0 0
        %1868 = vmatpush1.bf16.msra.mxu0 0
        %1869 = vmatprep.subr.bf16.mxu0 0
        %1870 = vmatpush1.bf16.msra.mxu0 0
        %1871 = vmatprep.subr.bf16.mxu0 0
        %1872 = vmatpush1.bf16.msra.mxu0 0
        %1873 = vmatprep.subr.bf16.mxu0 0
        %1874 = vmatpush1.bf16.msra.mxu0 0
        %1875 = vmatprep.subr.bf16.mxu0 0
        %1876 = vmatpush1.bf16.msra.mxu0 0
        %1877 = vmatprep.subr.bf16.mxu0 0
        %1878 = vmatpush1.bf16.msra.mxu0 0
        %1879 = vmatprep.subr.bf16.mxu0 0
        %1880 = vmatpush1.bf16.msra.mxu0 0
        %1881 = vmatprep.subr.bf16.mxu0 0
        %1882 = vmatpush1.bf16.msra.mxu0 0
        %1883 = vmatprep.subr.bf16.mxu0 0
        %1884 = vmatpush1.bf16.msra.mxu0 0
        %1885 = vmatprep.subr.bf16.mxu0 0
        %1886 = vmatpush1.bf16.msra.mxu0 0
        %1887 = vmatprep.subr.bf16.mxu0 0
        %1888 = vmatpush1.bf16.msra.mxu0 0
        %1889 = vmatprep.subr.bf16.mxu0 0
        %1890 = vmatpush1.bf16.msra.mxu0 0
        %1891 = vmatprep.mubr.bf16.mxu0 0
        %1892 = vmatmul.mubr.bf16.gmra.mrb[0].mxu0 %v1857
        %v1893 = vpop.f32.mrb[0].mxu0
        %v1894 = vadd.f32 0.0, %v1893
        %v1895 = vpop.f32.mrb[0].mxu0
        %v1896 = vpop.f32.mrb[0].mxu0
        %v1897 = vadd.f32 0.0, %v1896
        %v1898 = vpop.f32.mrb[0].mxu0
        %1899 = vdwg.mxu0
        %v1900 = vadd.f32 %v626, %v1894
        %v1901 = vadd.f32 %v627, %v1897
        %v1902 = vld [vmem:[%s10] sm:$0x1]
        %v1903 = vld [vmem:[%s11] sm:$0x1]
        %v1904 = vsel %vm655, %v1900, 0.0
        %1905 = vadd.xlane.f32.xlu0 %v1904
        %v1906 = vpop.xlane.xlu0 %1905
        %v1907 = vsel %vm655, %v1901, 0.0
        %1908 = vadd.xlane.f32.xlu0 %v1907
        %v1909 = vpop.xlane.xlu0 %1908
        %v1910 = vmul.f32 %v1906, %v662
        %v1911 = vmul.f32 %v1909, %v662
        %v1912 = vsub.f32 %v1900, %v1910
        %v1913 = vsub.f32 %v1901, %v1911
        %v1914 = vmul.f32 %v1912, %v1912
        %v1915 = vmul.f32 %v1913, %v1913
        %v1916 = vsel %vm655, %v1914, 0.0
        %1917 = vadd.xlane.f32.xlu0 %v1916
        %v1918 = vpop.xlane.xlu0 %1917
        %v1919 = vsel %vm655, %v1915, 0.0
        %1920 = vadd.xlane.f32.xlu0 %v1919
        %v1921 = vpop.xlane.xlu0 %1920
        %v1922 = vmul.f32 %v1918, %v675
        %v1923 = vmul.f32 %v1921, %v675
        %v1925 = vlaneseq
        %v1926 = vshrl.u32 %v1925, 7
        %v1927 = vsub.s32 0, %v1926
        %v1928 = vrot.slane %v1902, %v1927
        %v1930 = vmul.f32 %v1928, %v1912
        %v1931 = vmul.f32 %v1928, %v1913
        %v1932 = vrsqrt.pop %v1922
        %v1933 = vmul.f32 %v1922, %v1932
        %vm1934 = vcmp.eq.f32.partialorder %v1922, inf
        %v1935 = vsel %vm1934, %v1922, %v1933
        %vm1936 = vcmp.eq.f32.partialorder %v1922, 0.0
        %v1937 = vand.u32 %v1922, 2147483648
        %v1938 = vsel %vm1936, %v1937, %v1935
        %v1939 = vrsqrt.pop %v1923
        %v1940 = vmul.f32 %v1923, %v1939
        %vm1941 = vcmp.eq.f32.partialorder %v1923, inf
        %v1942 = vsel %vm1941, %v1923, %v1940
        %vm1943 = vcmp.eq.f32.partialorder %v1923, 0.0
        %v1944 = vand.u32 %v1923, 2147483648
        %v1945 = vsel %vm1943, %v1944, %v1942
        %v1946 = vadd.f32 %v1938, 1e-06
        %v1947 = vadd.f32 %v1945, 1e-06
        %v1948 = vrcp.pop %v1946
        %v1949 = vmul.f32 %v1930, %v1948
        %v1950 = vrcp.pop %v1947
        %v1951 = vmul.f32 %v1931, %v1950
        %v1953 = vlaneseq
        %v1954 = vshrl.u32 %v1953, 7
        %v1955 = vsub.s32 0, %v1954
        %v1956 = vrot.slane %v1903, %v1955
        %v1958 = vadd.f32 %v1949, %v1956
        %v1959 = vadd.f32 %v1951, %v1956
        %v1960 = vld [vmem:[%s13] sm:$0x1]
        %v1963 = vrot.slane %v1958, 6
        %v1964 = vrot.slane %v1959, 6
        %vm1967 = vcmask 1041408
        %v1968 = vsel %vm1967, 0.0, %v1963
        %v1969 = vsel %vm1967, 0.0, %v1964
        %v1970 = vrot.slane %v1958, 7
        %v1971 = vrot.slane %v1959, 7
        %vm1974 = vcmask 1040384
        %v1975 = vsel %vm1974, 0.0, %v1970
        %v1976 = vsel %vm1974, 0.0, %v1971
        %1979 = vrot.lane.b32.xlu0 %v1975, 32
        %v1980 = vpop.permute.xlu0 %1979
        %1981 = vrot.lane.b32.xlu0 %v1976, 32
        %v1982 = vpop.permute.xlu0 %1981
        %1985 = vrot.lane.b32.xlu0 %v1958, 64
        %v1986 = vpop.permute.xlu0 %1985
        %1987 = vrot.lane.b32.xlu0 %v1959, 64
        %v1988 = vpop.permute.xlu0 %1987
        %v1991 = vsel %vm655, %v1968, %v1980
        %v1992 = vsel %vm655, %v1969, %v1982
        %vm1993 = vcmask 523264
        %v1994 = vsel %vm1993, %v1991, %v1986
        %v1995 = vsel %vm1993, %v1992, %v1988
        %v1996 = vpack.c.bf16 %v1995, %v1994
        %v1997 = vld [vmem:[%s12] sm:$0xf]
        %v1998 = vld [vmem:[%s12 + $0x4] sm:$0xf]
        %v1999 = vld [vmem:[%s12 + $0x8] sm:$0xf]
        %v2000 = vld [vmem:[%s12 + $0xc] sm:$0xf]
        %v2001 = vld [vmem:[%s12 + $0x10] sm:$0xf]
        %v2002 = vld [vmem:[%s12 + $0x14] sm:$0xf]
        %v2003 = vld [vmem:[%s12 + $0x18] sm:$0xf]
        %v2004 = vld [vmem:[%s12 + $0x1c] sm:$0xf]
        %v2005 = vld [vmem:[%s12 + $0x20] sm:$0xf]
        %v2006 = vld [vmem:[%s12 + $0x24] sm:$0xf]
        %v2007 = vld [vmem:[%s12 + $0x28] sm:$0xf]
        %v2008 = vld [vmem:[%s12 + $0x2c] sm:$0xf]
        %v2010 = vlaneseq
        %v2011 = vshrl.u32 %v2010, 7
        %v2012 = vsub.s32 0, %v2011
        %v2013 = vrot.slane %v1960, %v2012
        %v2027 = vunpack.c.l.b16 %v1997
        %v2028 = vunpack.c.l.b16 %v1998
        %v2029 = vunpack.c.l.b16 %v1999
        %v2030 = vunpack.c.l.b16 %v2000
        %v2031 = vunpack.c.l.b16 %v2001
        %v2032 = vunpack.c.l.b16 %v2002
        %v2033 = vunpack.c.l.b16 %v2003
        %v2034 = vunpack.c.l.b16 %v2004
        %v2035 = vunpack.c.l.b16 %v2005
        %v2036 = vunpack.c.l.b16 %v2006
        %v2037 = vunpack.c.l.b16 %v2007
        %v2038 = vunpack.c.l.b16 %v2008
        %v2039 = vpack.c.b16 %v2028, %v2027
        %v2040 = vpack.c.b16 %v2030, %v2029
        %v2041 = vpack.c.b16 %v2032, %v2031
        %v2042 = vpack.c.b16 %v2034, %v2033
        %v2043 = vpack.c.b16 %v2036, %v2035
        %v2044 = vpack.c.b16 %v2038, %v2037
        %vm2051 = vcmask 785408
        %v2053 = vsel %vm2051, %v1996, 0
        %2055 = vmatprep.subr.bf16.mxu0 0
        %2056 = vmatpush1.bf16.msra.mxu0 %v2039
        %2057 = vmatprep.subr.bf16.mxu0 0
        %2058 = vmatpush1.bf16.msra.mxu0 %v2040
        %2059 = vmatprep.subr.bf16.mxu0 0
        %2060 = vmatpush1.bf16.msra.mxu0 %v2041
        %2061 = vmatprep.subr.bf16.mxu0 0
        %2062 = vmatpush1.bf16.msra.mxu0 %v2042
        %2063 = vmatprep.subr.bf16.mxu0 0
        %2064 = vmatpush1.bf16.msra.mxu0 %v2043
        %2065 = vmatprep.subr.bf16.mxu0 0
        %2066 = vmatpush1.bf16.msra.mxu0 %v2044
        %2067 = vmatprep.subr.bf16.mxu0 0
        %2068 = vmatpush1.bf16.msra.mxu0 0
        %2069 = vmatprep.subr.bf16.mxu0 0
        %2070 = vmatpush1.bf16.msra.mxu0 0
        %2071 = vmatprep.subr.bf16.mxu0 0
        %2072 = vmatpush1.bf16.msra.mxu0 0
        %2073 = vmatprep.subr.bf16.mxu0 0
        %2074 = vmatpush1.bf16.msra.mxu0 0
        %2075 = vmatprep.subr.bf16.mxu0 0
        %2076 = vmatpush1.bf16.msra.mxu0 0
        %2077 = vmatprep.subr.bf16.mxu0 0
        %2078 = vmatpush1.bf16.msra.mxu0 0
        %2079 = vmatprep.subr.bf16.mxu0 0
        %2080 = vmatpush1.bf16.msra.mxu0 0
        %2081 = vmatprep.subr.bf16.mxu0 0
        %2082 = vmatpush1.bf16.msra.mxu0 0
        %2083 = vmatprep.subr.bf16.mxu0 0
        %2084 = vmatpush1.bf16.msra.mxu0 0
        %2085 = vmatprep.subr.bf16.mxu0 0
        %2086 = vmatpush1.bf16.msra.mxu0 0
        %2087 = vmatprep.mubr.bf16.mxu0 0
        %2088 = vmatmul.mubr.bf16.gmra.mrb[0].mxu0 %v2053
        %v2089 = vpop.f32.mrb[0].mxu0
        %v2090 = vadd.f32 %v2013, %v2089
        %v2091 = vpop.f32.mrb[0].mxu0
        %v2092 = vpop.f32.mrb[0].mxu0
        %v2093 = vadd.f32 %v2013, %v2092
        %v2094 = vpop.f32.mrb[0].mxu0
        %2095 = vdwg.mxu0
        %v2096 = vmax.f32 %v2090, 0.0
        %v2097 = vmax.f32 %v2093, 0.0
        %v2098 = vld [vmem:[%s15] sm:$0x1]
        %v2101 = vrot.slane %v2096, 6
        %v2102 = vrot.slane %v2097, 6
        %v2105 = vsel %vm1967, 0.0, %v2101
        %v2106 = vsel %vm1967, 0.0, %v2102
        %v2107 = vrot.slane %v2096, 7
        %v2108 = vrot.slane %v2097, 7
        %v2111 = vsel %vm1974, 0.0, %v2107
        %v2112 = vsel %vm1974, 0.0, %v2108
        %2115 = vrot.lane.b32.xlu0 %v2111, 64
        %v2116 = vpop.permute.xlu0 %2115
        %2117 = vrot.lane.b32.xlu0 %v2112, 64
        %v2118 = vpop.permute.xlu0 %2117
        %v2121 = vsel %vm1993, %v2105, %v2116
        %v2122 = vsel %vm1993, %v2106, %v2118
        %v2123 = vpack.c.bf16 %v2122, %v2121
        %v2124 = vpack.c.bf16 %v2097, %v2096
        %v2125 = vld [vmem:[%s14] sm:$0xf]
        %v2126 = vld [vmem:[%s14 + $0x4] sm:$0xf]
        %v2127 = vld [vmem:[%s14 + $0x8] sm:$0xf]
        %v2128 = vld [vmem:[%s14 + $0xc] sm:$0xf]
        %v2129 = vld [vmem:[%s14 + $0x10] sm:$0xf]
        %v2130 = vld [vmem:[%s14 + $0x14] sm:$0xf]
        %v2131 = vld [vmem:[%s14 + $0x18] sm:$0xf]
        %v2132 = vld [vmem:[%s14 + $0x1c] sm:$0xf]
        %v2133 = vld [vmem:[%s14 + $0x20] sm:$0xf]
        %v2134 = vld [vmem:[%s14 + $0x24] sm:$0xf]
        %v2135 = vld [vmem:[%s14 + $0x28] sm:$0xf]
        %v2136 = vld [vmem:[%s14 + $0x2c] sm:$0xf]
        %v2137 = vld [vmem:[%s14 + $0x30] sm:$0xf]
        %v2138 = vld [vmem:[%s14 + $0x34] sm:$0xf]
        %v2139 = vld [vmem:[%s14 + $0x38] sm:$0xf]
        %v2140 = vld [vmem:[%s14 + $0x3c] sm:$0xf]
        %v2141 = vld [vmem:[%s14 + $0x40] sm:$0xf]
        %v2142 = vld [vmem:[%s14 + $0x44] sm:$0xf]
        %v2143 = vld [vmem:[%s14 + $0x48] sm:$0xf]
        %v2144 = vld [vmem:[%s14 + $0x4c] sm:$0xf]
        %v2145 = vld [vmem:[%s14 + $0x50] sm:$0xf]
        %v2146 = vld [vmem:[%s14 + $0x54] sm:$0xf]
        %v2147 = vld [vmem:[%s14 + $0x58] sm:$0xf]
        %v2148 = vld [vmem:[%s14 + $0x5c] sm:$0xf]
        %v2150 = vlaneseq
        %v2151 = vshrl.u32 %v2150, 7
        %v2152 = vsub.s32 0, %v2151
        %v2153 = vrot.slane %v2098, %v2152
        %v2179 = vunpack.c.l.b16 %v2125
        %v2180 = vunpack.c.l.b16 %v2126
        %v2181 = vunpack.c.l.b16 %v2127
        %v2182 = vunpack.c.l.b16 %v2128
        %v2183 = vunpack.c.l.b16 %v2129
        %v2184 = vunpack.c.l.b16 %v2130
        %v2185 = vunpack.c.l.b16 %v2131
        %v2186 = vunpack.c.l.b16 %v2132
        %v2187 = vunpack.c.l.b16 %v2133
        %v2188 = vunpack.c.l.b16 %v2134
        %v2189 = vunpack.c.l.b16 %v2135
        %v2190 = vunpack.c.l.b16 %v2136
        %v2191 = vunpack.c.l.b16 %v2137
        %v2192 = vunpack.c.l.b16 %v2138
        %v2193 = vunpack.c.l.b16 %v2139
        %v2194 = vunpack.c.l.b16 %v2140
        %v2195 = vunpack.c.l.b16 %v2141
        %v2196 = vunpack.c.l.b16 %v2142
        %v2197 = vunpack.c.l.b16 %v2143
        %v2198 = vunpack.c.l.b16 %v2144
        %v2199 = vunpack.c.l.b16 %v2145
        %v2200 = vunpack.c.l.b16 %v2146
        %v2201 = vunpack.c.l.b16 %v2147
        %v2202 = vunpack.c.l.b16 %v2148
        %v2203 = vpack.c.b16 %v2180, %v2179
        %v2204 = vpack.c.b16 %v2182, %v2181
        %v2205 = vpack.c.b16 %v2184, %v2183
        %v2206 = vpack.c.b16 %v2186, %v2185
        %v2207 = vpack.c.b16 %v2188, %v2187
        %v2208 = vpack.c.b16 %v2190, %v2189
        %v2209 = vpack.c.b16 %v2192, %v2191
        %v2210 = vpack.c.b16 %v2194, %v2193
        %v2211 = vpack.c.b16 %v2196, %v2195
        %v2212 = vpack.c.b16 %v2198, %v2197
        %v2213 = vpack.c.b16 %v2200, %v2199
        %v2214 = vpack.c.b16 %v2202, %v2201
        %v2228 = vsel %vm1993, %v2124, 0
        %2230 = vmatprep.subr.bf16.mxu0 0
        %2231 = vmatpush1.bf16.msra.mxu0 %v2203
        %2232 = vmatprep.subr.bf16.mxu0 0
        %2233 = vmatpush1.bf16.msra.mxu0 %v2204
        %2234 = vmatprep.subr.bf16.mxu0 0
        %2235 = vmatpush1.bf16.msra.mxu0 %v2205
        %2236 = vmatprep.subr.bf16.mxu0 0
        %2237 = vmatpush1.bf16.msra.mxu0 %v2206
        %2238 = vmatprep.subr.bf16.mxu0 0
        %2239 = vmatpush1.bf16.msra.mxu0 %v2207
        %2240 = vmatprep.subr.bf16.mxu0 0
        %2241 = vmatpush1.bf16.msra.mxu0 %v2208
        %2242 = vmatprep.subr.bf16.mxu0 0
        %2243 = vmatpush1.bf16.msra.mxu0 %v2209
        %2244 = vmatprep.subr.bf16.mxu0 0
        %2245 = vmatpush1.bf16.msra.mxu0 %v2210
        %2246 = vmatprep.subr.bf16.mxu0 0
        %2247 = vmatpush1.bf16.msra.mxu0 %v2211
        %2248 = vmatprep.subr.bf16.mxu0 0
        %2249 = vmatpush1.bf16.msra.mxu0 %v2212
        %2250 = vmatprep.subr.bf16.mxu0 0
        %2251 = vmatpush1.bf16.msra.mxu0 %v2213
        %2252 = vmatprep.subr.bf16.mxu0 0
        %2253 = vmatpush1.bf16.msra.mxu0 %v2214
        %2254 = vmatprep.subr.bf16.mxu0 0
        %2255 = vmatpush1.bf16.msra.mxu0 0
        %2256 = vmatprep.subr.bf16.mxu0 0
        %2257 = vmatpush1.bf16.msra.mxu0 0
        %2258 = vmatprep.subr.bf16.mxu0 0
        %2259 = vmatpush1.bf16.msra.mxu0 0
        %2260 = vmatprep.subr.bf16.mxu0 0
        %2261 = vmatpush1.bf16.msra.mxu0 0
        %2262 = vmatprep.mubr.bf16.mxu0 %v2228
        %2263 = vmatmul.mubr.bf16.gmra.mrb[0].mxu0 %v2123
        %v2264 = vpop.f32.mrb[0].mxu0
        %v2265 = vadd.f32 %v2153, %v2264
        %v2266 = vpop.f32.mrb[0].mxu0
        %v2267 = vpop.f32.mrb[0].mxu0
        %v2268 = vadd.f32 %v2153, %v2267
        %v2269 = vpop.f32.mrb[0].mxu0
        %2270 = vdwg.mxu0
        %v2271 = vadd.f32 %v1900, %v2265
        %v2272 = vadd.f32 %v1901, %v2268
        %2273 = vst.msk [vmem:[%s592] sm:$0xff] %vm655, %v2271
        %2274 = vst.msk [vmem:[%s592 + $0x8] sm:$0xff] %vm655, %v2272
        %s2275 = sand.u32 %s399, 1
        %s2276 = scalar_lea.sflag [#allocation3], %s2275
        %s2277 = sand.u32 %s399, 1
        %s2278 = smul.addr %s2277, 16
        %s2279 = scalar_lea.vmem [#allocation2], %s2278
        %s2280 = sand.u32 %s425, 1
        %s2281 = scalar_lea.sflag [#allocation5], %s2280
        %s2282 = sand.u32 %s425, 1
        %s2283 = smul.addr %s2282, 16
        %s2284 = scalar_lea.vmem [#allocation4], %s2283
        // Predicated region
        $region85: #{tpu_custom_call.1} parent=83 // pred_check
          %p2285 = pneg %p409
        $region86: #{tpu_custom_call.1} parent=83 // pred_check_branch
          %2287 = sbr.rel (%p2285) target = $region88
        $region87: #{tpu_custom_call.1} parent=83 // pred_region
          %s2288 = smul.u32 2, %s35
          %s2290 = ssub.s32 256, 256
          %2291 = vsyncadd %s2276, %s2290
          %s2292 = smul.addr %s2288, 128
          %s2293 = scalar_lea.hbm %s16, %s2292
          %s2294 = sshll.u32 %s2279, 4
          %s2295 = int_to_ptr.vmem [resolvable:$true] %s2294
          %2300 = dma.vmem_to_hbm [thread:$0]  %s2295, 256, %s2293, %s2276, 128, 128, 8
        $region88: #{tpu_custom_call.1} parent=83 // pred_fallthru
          _
        // Predicated region
        $region89: #{tpu_custom_call.1} parent=83 // pred_check
          %p2301 = pneg %p435
        $region90: #{tpu_custom_call.1} parent=83 // pred_check_branch
          %2303 = sbr.rel (%p2301) target = $region92
        $region91: #{tpu_custom_call.1} parent=83 // pred_region
          %s2304 = smul.u32 2, %s35
          %s2306 = ssub.s32 256, 256
          %2307 = vsyncadd %s2281, %s2306
          %s2308 = smul.addr %s2304, 128
          %s2309 = scalar_lea.hbm %s17, %s2308
          %s2310 = sshll.u32 %s2284, 4
          %s2311 = int_to_ptr.vmem [resolvable:$true] %s2310
          %2316 = dma.vmem_to_hbm [thread:$0]  %s2311, 256, %s2309, %s2281, 128, 128, 8
        $region92: #{tpu_custom_call.1} parent=83 // pred_fallthru
          _
      $region84: #{tpu_custom_call.1} parent=5 // pred_fallthru
        _
      %p2317 = scmp.le.s32.totalorder 2, %s30
      // Predicated region
      $region93: #{tpu_custom_call.1} parent=5 // pred_check
        %p2318 = pneg %p2317
      $region94: #{tpu_custom_call.1} parent=5 // pred_check_branch
        %2320 = sbr.rel (%p2318) target = $region96
      $region95: #{tpu_custom_call.1} parent=5 // pred_region
        %s2321 = ssub.s32 %s30, 2
        // Predicated region
        $region97: #{tpu_custom_call.1} parent=95 // pred_check
          %p2322 = pneg %p415
        $region98: #{tpu_custom_call.1} parent=95 // pred_check_branch
          %2324 = sbr.rel (%p2322) target = $region100
        $region99: #{tpu_custom_call.1} parent=95 // pred_region
          %s2325 = sand.u32 %s400, 1
          %s2326 = scalar_lea.sflag [#allocation3], %s2325
          %s2327 = sand.u32 %s400, 1
          %s2328 = smul.addr %s2327, 16
          %s2329 = scalar_lea.vmem [#allocation2], %s2328
          %2330 = dma.done %s2326, 256
        $region100: #{tpu_custom_call.1} parent=95 // pred_fallthru
          _
        // Predicated region
        $region101: #{tpu_custom_call.1} parent=95 // pred_check
          %p2331 = pneg %p441
        $region102: #{tpu_custom_call.1} parent=95 // pred_check_branch
          %2333 = sbr.rel (%p2331) target = $region104
        $region103: #{tpu_custom_call.1} parent=95 // pred_region
          %s2334 = sand.u32 %s426, 1
          %s2335 = scalar_lea.sflag [#allocation5], %s2334
          %s2336 = sand.u32 %s426, 1
          %s2337 = smul.addr %s2336, 16
          %s2338 = scalar_lea.vmem [#allocation4], %s2337
          %2339 = dma.done %s2335, 256
        $region104: #{tpu_custom_call.1} parent=95 // pred_fallthru
          _
      $region96: #{tpu_custom_call.1} parent=5 // pred_fallthru
        _
    $region6: #{tpu_custom_call.1} parent=1 // loop_footer
      %s34 = sadd.s32 1, %s30
    $region7: #{tpu_custom_call.1} parent=1 // loop_footer_branch
      %29 = sbr.rel target = $region3
    $region8: #{tpu_custom_call.1} parent=1 // loop_exit
      _
    %2340 = vsyncpa [#allocation3], 1
    %s2341 = scalar_lea.sflag [#allocation3], 1
    %2342 = vsyncpa %s2341, 1
    %2343 = vsyncpa [#allocation5], 1
    %s2344 = scalar_lea.sflag [#allocation5], 1
    %2345 = vsyncpa %s2344, 1

</llo_original>
